<compile_context>
chip_gen: v7x
topology: tpu7x:2x2x1
jax: 0.10.0
libtpu: 0.0.40
codegen_flags: <defaults>
</compile_context>

<pallas_src>
import jax
import jax.numpy as jnp
from jax import lax
from jax.experimental import pallas as pl
from jax.experimental.pallas import tpu as pltpu

C_IN = 320
C_OUT = 128
EPS = 1e-5
_VMEM_LIMIT = 32 * 1024 * 1024  # safe on v5e/v6e (128 MiB phys) and v7x (64 MiB phys)
_MAX_HW_TILE = 2048


def _pass1_kernel(w_ref, x_ref, y_ref, sum_ref, sumsq_ref):
    """ReLU + 1x1 conv (matmul) for one (batch, HW-tile) block + BN stat streaming.

    w_ref:     (C_OUT, C_IN)   bf16, resident across the grid
    x_ref:     (C_IN, hw_tile) f32 input block (batch dim squeezed)
    y_ref:     (C_OUT, hw_tile) f32 conv output block
    sum_ref:   (C_OUT, 1) f32 per-channel running sum    (resident accumulator)
    sumsq_ref: (C_OUT, 1) f32 per-channel running sumsq  (resident accumulator)
    """
    ni = pl.program_id(0)
    ti = pl.program_id(1)

    @pl.when((ni == 0) & (ti == 0))
    def _init():
        sum_ref[...] = jnp.zeros_like(sum_ref)
        sumsq_ref[...] = jnp.zeros_like(sumsq_ref)

    # ReLU, then bf16 MXU inputs with f32 accumulation.
    x = jnp.maximum(x_ref[...], 0.0).astype(jnp.bfloat16)
    y = jnp.dot(w_ref[...], x, preferred_element_type=jnp.float32)  # (C_OUT, hw_tile)
    y_ref[...] = y

    # f32 streamed statistics (lane-axis reduce -> (C_OUT, 1)).
    sum_ref[...] += jnp.sum(y, axis=1, keepdims=True)
    sumsq_ref[...] += jnp.sum(y * y, axis=1, keepdims=True)


def _pass2_kernel(y_ref, scale_ref, shift_ref, o_ref):
    # y: (C_OUT, hw_tile); scale/shift: (C_OUT, 1) broadcast along lanes.
    o_ref[...] = y_ref[...] * scale_ref[...] + shift_ref[...]


def _choose_hw_tile(hw):
    """Pick a lane-dense HW tile (multiple of 128); pad HW if needed."""
    for t in (_MAX_HW_TILE, 1024, 512, 256, 128):
        if hw % t == 0:
            return t, hw
    hw_pad = pl.cdiv(hw, 128) * 128
    for t in (512, 256, 128):
        if hw_pad % t == 0:
            return t, hw_pad
    return 128, hw_pad


@jax.jit
def relu_conv1x1_batchnorm(x_nchw, w_oihw, gamma, beta):
    """x_nchw: (N, C_IN, H, W) f32 -> (N, C_OUT, H, W) f32."""
    n, c, h, w = x_nchw.shape
    assert c == C_IN
    hw = h * w
    hw_tile, hw_pad = _choose_hw_tile(hw)
    num_t = hw_pad // hw_tile
    grid = (n, num_t)

    # Native layout: 1x1 conv == W(C_OUT, C_IN) @ x(C_IN, HW) per batch item.
    x3 = x_nchw.reshape(n, C_IN, hw)
    if hw_pad != hw:
        # Zero padding is exact for the stats: relu(0)=0, W@0=0, and we divide
        # by the true element count below. Padded output columns are sliced off.
        x3 = jnp.pad(x3, ((0, 0), (0, 0), (0, hw_pad - hw)))

    w_mat = w_oihw.reshape(C_OUT, C_IN).astype(jnp.bfloat16)

    # ---- pass 1: ReLU + conv + per-channel sum / sumsq ----
    y, ch_sum, ch_sumsq = pl.pallas_call(
        _pass1_kernel,
        out_shape=(
            jax.ShapeDtypeStruct((n, C_OUT, hw_pad), jnp.float32),
            jax.ShapeDtypeStruct((C_OUT, 1), jnp.float32),
            jax.ShapeDtypeStruct((C_OUT, 1), jnp.float32),
        ),
        grid=grid,
        in_specs=[
            pl.BlockSpec((C_OUT, C_IN), lambda ni, ti: (0, 0)),
            pl.BlockSpec((None, C_IN, hw_tile), lambda ni, ti: (ni, 0, ti)),
        ],
        out_specs=(
            pl.BlockSpec((None, C_OUT, hw_tile), lambda ni, ti: (ni, 0, ti)),
            pl.BlockSpec((C_OUT, 1), lambda ni, ti: (0, 0)),
            pl.BlockSpec((C_OUT, 1), lambda ni, ti: (0, 0)),
        ),
        compiler_params=pltpu.CompilerParams(
            dimension_semantics=("arbitrary", "arbitrary"),  # resident stat accumulators
            vmem_limit_bytes=_VMEM_LIMIT,
        ),
    )(w_mat, x3)

    # ---- tiny per-channel scale/shift (training-mode batch statistics) ----
    count = jnp.float32(n * hw)  # true count (padded columns contribute zero)
    mean = ch_sum / count
    var = jnp.maximum(ch_sumsq / count - mean * mean, 0.0)
    inv_std = lax.rsqrt(var + EPS)
    scale = gamma.reshape(C_OUT, 1).astype(jnp.float32) * inv_std
    shift = beta.reshape(C_OUT, 1).astype(jnp.float32) - mean * scale

    # ---- pass 2: normalize y in place ----
    out = pl.pallas_call(
        _pass2_kernel,
        out_shape=jax.ShapeDtypeStruct((n, C_OUT, hw_pad), jnp.float32),
        grid=grid,
        in_specs=[
            pl.BlockSpec((None, C_OUT, hw_tile), lambda ni, ti: (ni, 0, ti)),
            pl.BlockSpec((C_OUT, 1), lambda ni, ti: (0, 0)),
            pl.BlockSpec((C_OUT, 1), lambda ni, ti: (0, 0)),
        ],
        out_specs=pl.BlockSpec((None, C_OUT, hw_tile), lambda ni, ti: (ni, 0, ti)),
        input_output_aliases={0: 0},  # reuse the y HBM buffer for the output
        compiler_params=pltpu.CompilerParams(
            dimension_semantics=("parallel", "parallel"),  # megacore on v7x
            vmem_limit_bytes=_VMEM_LIMIT,
        ),
    )(y, scale, shift)

    return out[:, :, :hw].reshape(n, C_OUT, h, w)


def _reference(x_nchw, w_oihw, gamma, beta):
    x = jnp.maximum(x_nchw, 0.0)
    y = lax.conv_general_dilated(
        x, w_oihw, window_strides=(1, 1), padding="VALID",
        dimension_numbers=("NCHW", "OIHW", "NCHW"))
    mean = jnp.mean(y, axis=(0, 2, 3), keepdims=True)
    var = jnp.mean((y - mean) ** 2, axis=(0, 2, 3), keepdims=True)
    return (y - mean) * lax.rsqrt(var + EPS) * gamma.reshape(1, -1, 1, 1) \
        + beta.reshape(1, -1, 1, 1)


if __name__ == "__main__":
    key = jax.random.PRNGKey(0)
    kx, kw, kg, kb = jax.random.split(key, 4)

    # Deterministic synthetic parameters (channels fixed by the module: 320 -> 128).
    w = jax.random.normal(kw, (C_OUT, C_IN, 1, 1), dtype=jnp.float32) * 0.05
    gamma = 1.0 + 0.1 * jax.random.normal(kg, (C_OUT,), dtype=jnp.float32)
    beta = 0.1 * jax.random.normal(kb, (C_OUT,), dtype=jnp.float32)

    # Tolerances account for bf16 MXU inputs (f32 accumulation).
    ATOL = RTOL = 2e-2

    # Small shape: HW = 256 (multiple of 128 -> no padding path).
    x_small = jax.random.normal(kx, (2, C_IN, 16, 16), dtype=jnp.float32)
    out_small = jax.block_until_ready(relu_conv1x1_batchnorm(x_small, w, gamma, beta))
    ref_small = _reference(x_small, w, gamma, beta)
    assert out_small.shape == (2, C_OUT, 16, 16)
    assert jnp.allclose(out_small, ref_small, atol=ATOL, rtol=RTOL), \
        float(jnp.max(jnp.abs(out_small - ref_small)))

    # The module's own shape: HW = 784 (exercises the lane-padding path).
    x_mod = jax.random.normal(kx, (1, C_IN, 28, 28), dtype=jnp.float32)
    out_mod = jax.block_until_ready(relu_conv1x1_batchnorm(x_mod, w, gamma, beta))
    ref_mod = _reference(x_mod, w, gamma, beta)
    assert out_mod.shape == (1, C_OUT, 28, 28)
    assert jnp.allclose(out_mod, ref_mod, atol=ATOL, rtol=RTOL), \
        float(jnp.max(jnp.abs(out_mod - ref_mod)))

    print("KERNEL_OK")
</pallas_src>

<mosaic_0001>
module attributes {stable_mosaic.version = 11 : i64} {
  func.func @_pass1_kernel(%arg0: i32, %arg1: i32, %arg2: memref<128x320xbf16, #tpu.memory_space<vmem>>, %arg3: memref<1x320x256xf32, #tpu.memory_space<vmem>>, %arg4: memref<1x128x256xf32, #tpu.memory_space<vmem>>, %arg5: memref<128x1xf32, #tpu.memory_space<vmem>>, %arg6: memref<128x1xf32, #tpu.memory_space<vmem>>) attributes {dimension_semantics = [#tpu.dimension_semantics<arbitrary>, #tpu.dimension_semantics<arbitrary>], iteration_bounds = array<i64: 2, 1>, scalar_prefetch = 0 : i64, scratch_operands = 0 : i64, tpu.core_type = #tpu.core_type<tc>, window_params = [{pipeline_mode = #tpu.pipeline_mode<synchronous>, transform_indices = @transform_0, window_bounds = array<i64: 128, 320>}, {transform_indices = @transform_1, window_bounds = array<i64: 1, 320, 256>}, {transform_indices = @transform_2, window_bounds = array<i64: 1, 128, 256>}, {pipeline_mode = #tpu.pipeline_mode<synchronous>, transform_indices = @transform_3, window_bounds = array<i64: 128, 1>}, {pipeline_mode = #tpu.pipeline_mode<synchronous>, transform_indices = @transform_4, window_bounds = array<i64: 128, 1>}]} {
    %c0_i32 = arith.constant 0 : i32
    %0 = arith.cmpi eq, %arg0, %c0_i32 : i32
    %c0_i32_0 = arith.constant 0 : i32
    %1 = arith.cmpi eq, %arg1, %c0_i32_0 : i32
    %2 = arith.andi %0, %1 : i1
    %3 = arith.extui %2 : i1 to i32
    %c0_i32_1 = arith.constant 0 : i32
    %4 = arith.cmpi ne, %3, %c0_i32_1 : i32
    scf.if %4 {
      %cst_20 = arith.constant 0.000000e+00 : f32
      %26 = vector.broadcast %cst_20 : f32 to vector<128x1xf32>
      %c0_21 = arith.constant 0 : index
      %c0_22 = arith.constant 0 : index
      %27 = vector.load %arg5[%c0_21, %c0_22] : memref<128x1xf32, #tpu.memory_space<vmem>>, vector<128x1xf32>
      tpu.vector_store %arg5[%c0_21, %c0_22], %26 {strides = array<i32>} : memref<128x1xf32, #tpu.memory_space<vmem>>, vector<128x1xf32>,
      %cst_23 = arith.constant 0.000000e+00 : f32
      %28 = vector.broadcast %cst_23 : f32 to vector<128x1xf32>
      %c0_24 = arith.constant 0 : index
      %c0_25 = arith.constant 0 : index
      %29 = vector.load %arg6[%c0_24, %c0_25] : memref<128x1xf32, #tpu.memory_space<vmem>>, vector<128x1xf32>
      tpu.vector_store %arg6[%c0_24, %c0_25], %28 {strides = array<i32>} : memref<128x1xf32, #tpu.memory_space<vmem>>, vector<128x1xf32>,
    } else {
    }
    %c0 = arith.constant 0 : index
    %c0_2 = arith.constant 0 : index
    %c0_3 = arith.constant 0 : index
    %5 = vector.load %arg3[%c0, %c0_2, %c0_3] : memref<1x320x256xf32, #tpu.memory_space<vmem>>, vector<1x320x256xf32>
    %6 = vector.shape_cast %5 : vector<1x320x256xf32> to vector<320x256xf32>
    %cst = arith.constant 0.000000e+00 : f32
    %7 = vector.broadcast %cst : f32 to vector<320x256xf32>
    %8 = arith.maximumf %6, %7 : vector<320x256xf32>
    %9 = arith.truncf %8 : vector<320x256xf32> to vector<320x256xbf16>
    %c0_4 = arith.constant 0 : index
    %c0_5 = arith.constant 0 : index
    %10 = vector.load %arg2[%c0_4, %c0_5] : memref<128x320xbf16, #tpu.memory_space<vmem>>, vector<128x320xbf16>
    %cst_6 = arith.constant dense<0.000000e+00> : vector<128x256xf32>
    %11 = tpu.matmul %10, %9, %cst_6 {dimension_numbers = #tpu.dot_dimension_numbers<[1], [0], [0], [1], [0, 0, 1, 1], [], []>} : vector<128x320xbf16>, vector<320x256xbf16>, vector<128x256xf32> -> vector<128x256xf32>
    %c0_7 = arith.constant 0 : index
    %c0_8 = arith.constant 0 : index
    %c0_9 = arith.constant 0 : index
    %12 = vector.load %arg4[%c0_7, %c0_8, %c0_9] : memref<1x128x256xf32, #tpu.memory_space<vmem>>, vector<1x128x256xf32>
    %13 = vector.shape_cast %12 : vector<1x128x256xf32> to vector<128x256xf32>
    %14 = vector.shape_cast %11 : vector<128x256xf32> to vector<1x128x256xf32>
    tpu.vector_store %arg4[%c0_7, %c0_8, %c0_9], %14 {strides = array<i32>} : memref<1x128x256xf32, #tpu.memory_space<vmem>>, vector<1x128x256xf32>,
    %c0_10 = arith.constant 0 : index
    %c0_11 = arith.constant 0 : index
    %15 = vector.load %arg5[%c0_10, %c0_11] : memref<128x1xf32, #tpu.memory_space<vmem>>, vector<128x1xf32>
    %cst_12 = arith.constant dense<0.000000e+00> : vector<128xf32>
    %16 = vector.multi_reduction <add>, %11, %cst_12 [1] : vector<128x256xf32> to vector<128xf32>
    %17 = vector.shape_cast %16 : vector<128xf32> to vector<128x1xf32>
    %18 = arith.addf %15, %17 : vector<128x1xf32>
    %c0_13 = arith.constant 0 : index
    %c0_14 = arith.constant 0 : index
    %19 = vector.load %arg5[%c0_13, %c0_14] : memref<128x1xf32, #tpu.memory_space<vmem>>, vector<128x1xf32>
    tpu.vector_store %arg5[%c0_13, %c0_14], %18 {strides = array<i32>} : memref<128x1xf32, #tpu.memory_space<vmem>>, vector<128x1xf32>,
    %c0_15 = arith.constant 0 : index
    %c0_16 = arith.constant 0 : index
    %20 = vector.load %arg6[%c0_15, %c0_16] : memref<128x1xf32, #tpu.memory_space<vmem>>, vector<128x1xf32>
    %21 = arith.mulf %11, %11 : vector<128x256xf32>
    %cst_17 = arith.constant dense<0.000000e+00> : vector<128xf32>
    %22 = vector.multi_reduction <add>, %21, %cst_17 [1] : vector<128x256xf32> to vector<128xf32>
    %23 = vector.shape_cast %22 : vector<128xf32> to vector<128x1xf32>
    %24 = arith.addf %20, %23 : vector<128x1xf32>
    %c0_18 = arith.constant 0 : index
    %c0_19 = arith.constant 0 : index
    %25 = vector.load %arg6[%c0_18, %c0_19] : memref<128x1xf32, #tpu.memory_space<vmem>>, vector<128x1xf32>
    tpu.vector_store %arg6[%c0_18, %c0_19], %24 {strides = array<i32>} : memref<128x1xf32, #tpu.memory_space<vmem>>, vector<128x1xf32>,
    return
  }
  func.func @transform_0(%arg0: i32, %arg1: i32) -> (i32, i32) {
    %c0_i32 = arith.constant 0 : i32
    %c0_i32_0 = arith.constant 0 : i32
    %c0_i32_1 = arith.constant 0 : i32
    return %c0_i32, %c0_i32_0 : i32, i32
  }
  func.func @transform_1(%arg0: i32, %arg1: i32) -> (i32, i32, i32) {
    %c0_i32 = arith.constant 0 : i32
    %c0_i32_0 = arith.constant 0 : i32
    return %arg0, %c0_i32, %arg1 : i32, i32, i32
  }
  func.func @transform_2(%arg0: i32, %arg1: i32) -> (i32, i32, i32) {
    %c0_i32 = arith.constant 0 : i32
    %c0_i32_0 = arith.constant 0 : i32
    return %arg0, %c0_i32, %arg1 : i32, i32, i32
  }
  func.func @transform_3(%arg0: i32, %arg1: i32) -> (i32, i32) {
    %c0_i32 = arith.constant 0 : i32
    %c0_i32_0 = arith.constant 0 : i32
    %c0_i32_1 = arith.constant 0 : i32
    return %c0_i32, %c0_i32_0 : i32, i32
  }
  func.func @transform_4(%arg0: i32, %arg1: i32) -> (i32, i32) {
    %c0_i32 = arith.constant 0 : i32
    %c0_i32_0 = arith.constant 0 : i32
    %c0_i32_1 = arith.constant 0 : i32
    return %c0_i32, %c0_i32_0 : i32, i32
  }
}

module attributes {stable_mosaic.version = 11 : i64} {
  func.func @_pass2_kernel(%arg0: i32, %arg1: i32, %arg2: memref<1x128x256xf32, #tpu.memory_space<vmem>>, %arg3: memref<128x1xf32, #tpu.memory_space<vmem>>, %arg4: memref<128x1xf32, #tpu.memory_space<vmem>>, %arg5: memref<1x128x256xf32, #tpu.memory_space<vmem>>) attributes {dimension_semantics = [#tpu.dimension_semantics<parallel>, #tpu.dimension_semantics<parallel>], iteration_bounds = array<i64: 2, 1>, scalar_prefetch = 0 : i64, scratch_operands = 0 : i64, tpu.core_type = #tpu.core_type<tc>, window_params = [{transform_indices = @transform_0, window_bounds = array<i64: 1, 128, 256>}, {pipeline_mode = #tpu.pipeline_mode<synchronous>, transform_indices = @transform_1, window_bounds = array<i64: 128, 1>}, {pipeline_mode = #tpu.pipeline_mode<synchronous>, transform_indices = @transform_2, window_bounds = array<i64: 128, 1>}, {transform_indices = @transform_3, window_bounds = array<i64: 1, 128, 256>}]} {
    %c0 = arith.constant 0 : index
    %c0_0 = arith.constant 0 : index
    %c0_1 = arith.constant 0 : index
    %0 = vector.load %arg2[%c0, %c0_0, %c0_1] : memref<1x128x256xf32, #tpu.memory_space<vmem>>, vector<1x128x256xf32>
    %1 = vector.shape_cast %0 : vector<1x128x256xf32> to vector<128x256xf32>
    %c0_2 = arith.constant 0 : index
    %c0_3 = arith.constant 0 : index
    %2 = vector.load %arg3[%c0_2, %c0_3] : memref<128x1xf32, #tpu.memory_space<vmem>>, vector<128x1xf32>
    %3 = vector.broadcast %2 : vector<128x1xf32> to vector<128x256xf32>
    %4 = arith.mulf %1, %3 : vector<128x256xf32>
    %c0_4 = arith.constant 0 : index
    %c0_5 = arith.constant 0 : index
    %5 = vector.load %arg4[%c0_4, %c0_5] : memref<128x1xf32, #tpu.memory_space<vmem>>, vector<128x1xf32>
    %6 = vector.broadcast %5 : vector<128x1xf32> to vector<128x256xf32>
    %7 = arith.addf %4, %6 : vector<128x256xf32>
    %c0_6 = arith.constant 0 : index
    %c0_7 = arith.constant 0 : index
    %c0_8 = arith.constant 0 : index
    %8 = vector.load %arg5[%c0_6, %c0_7, %c0_8] : memref<1x128x256xf32, #tpu.memory_space<vmem>>, vector<1x128x256xf32>
    %9 = vector.shape_cast %8 : vector<1x128x256xf32> to vector<128x256xf32>
    %10 = vector.shape_cast %7 : vector<128x256xf32> to vector<1x128x256xf32>
    tpu.vector_store %arg5[%c0_6, %c0_7, %c0_8], %10 {strides = array<i32>} : memref<1x128x256xf32, #tpu.memory_space<vmem>>, vector<1x128x256xf32>,
    return
  }
  func.func @transform_0(%arg0: i32, %arg1: i32) -> (i32, i32, i32) {
    %c0_i32 = arith.constant 0 : i32
    %c0_i32_0 = arith.constant 0 : i32
    return %arg0, %c0_i32, %arg1 : i32, i32, i32
  }
  func.func @transform_1(%arg0: i32, %arg1: i32) -> (i32, i32) {
    %c0_i32 = arith.constant 0 : i32
    %c0_i32_0 = arith.constant 0 : i32
    %c0_i32_1 = arith.constant 0 : i32
    return %c0_i32, %c0_i32_0 : i32, i32
  }
  func.func @transform_2(%arg0: i32, %arg1: i32) -> (i32, i32) {
    %c0_i32 = arith.constant 0 : i32
    %c0_i32_0 = arith.constant 0 : i32
    %c0_i32_1 = arith.constant 0 : i32
    return %c0_i32, %c0_i32_0 : i32, i32
  }
  func.func @transform_3(%arg0: i32, %arg1: i32) -> (i32, i32, i32) {
    %c0_i32 = arith.constant 0 : i32
    %c0_i32_0 = arith.constant 0 : i32
    return %arg0, %c0_i32, %arg1 : i32, i32, i32
  }
}

</mosaic_0001>

<llo_original>
// kernel: relu_conv1x1_batchnorm.3
$region0: #{relu_conv1x1_batchnorm.3}
  #allocation0 [shape = 'u32[]', space=smem, size = 0x4, offset = 0x4, fixed_abs, tag = 'smem constant byte address 0x4 - core index']
  #allocation1 [shape = 'u32[144,128]{1,0:T(1,128)}', space=vmem, size = 0x12000, scoped, tag = 'internal scratch']
  %s0 = inlined_call_operand.vmem [shape: f32[2,128,256], index: 0, kind: input, shape index: {}, may-alias: {0,3}]
  %s1 = inlined_call_operand.vmem [shape: f32[128,1], index: 1, kind: input, shape index: {}]
  %s2 = inlined_call_operand.vmem [shape: f32[128,1], index: 2, kind: input, shape index: {}]
  %s3 = inlined_call_operand.vmem [shape: f32[2,128,256], index: 3, kind: output, shape index: {}, may-alias: {0,3}]
  %s4 = sld [smem:[#allocation0]]
  $region45: #{relu_conv1x1_batchnorm.3} parent=0
    _
  %s6 = ssub.s32 1, %s4
  %s7 = scalar_select 0, %s6, %s4
  loop: start=0, step=1, limit=4
  $region2: #{relu_conv1x1_batchnorm.3} parent=0 // loop_pre_header
    _
  $region3: #{relu_conv1x1_batchnorm.3} parent=0 // loop_header
    %s9 = sphi 0, %s13
    %p10 = scmp.ge.s32.totalorder %s9, 4
    %s16 = sphi 0, %s28
    %s17 = sphi 0, %s24
    %s18 = sphi 0, %s16
    %s19 = sphi 0, %s17
    %s20 = sphi 0, %s18
    %s21 = sphi 0, %s19
    %s33 = sphi 0, %s35
    %s36 = sphi 0, %s33
    %s37 = sphi 0, %s36
    %s53 = sphi 0, %s37
    %s57 = sphi 0, %s57
    %s59 = sphi 0, %s57
    %s60 = sphi 0, %s59
    %s74 = sphi 0, %s60
    %s78 = sphi 0, %s78
    %s80 = sphi 0, %s78
    %s81 = sphi 0, %s80
    %s95 = sphi 0, %s81
    %s103 = sphi 0, %s105
    %s106 = sphi 0, %s103
    %s107 = sphi 0, %s106
    %s123 = sphi 0, %s107
  $region4: #{relu_conv1x1_batchnorm.3} parent=0 // loop_header_branch
    %12 = sbr.rel (%p10) target = $region8
  $region5: #{relu_conv1x1_batchnorm.3} parent=0 // loop_body
    %s14 = ssub.s32 %s9, 1
    %s15 = ssub.s32 %s9, 2
    %s22 = sadd.s32 1, %s17
    %p23 = scmp.ge.s32.totalorder %s22, 1
    %s24 = scalar_select %p23, 0, %s22
    %s25 = sadd.s32 1, %s16
    %s26 = scalar_select %p23, %s25, %s16
    %p27 = scmp.ge.s32.totalorder %s26, 2
    %s28 = scalar_select %p27, 0, %s26
    %s29 = ssub.s32 %s16, %s28
    %s30 = ssub.s32 %s17, %s24
    %s31 = sor.u32 %s29, %s30
    %p32 = scmp.eq.s32.totalorder %s31, 0
    %s34 = sadd.s32 %s33, 1
    %s35 = scalar_select %p32, %s33, %s34
    %p38 = pneg %p32
    %p39 = scmp.eq.s32.totalorder %s9, 1
    %p40 = por %p38, %p39
    %p41 = scmp.ne.s32.totalorder %s33, %s36
    %p42 = scmp.eq.s32.totalorder %s9, 0
    %p43 = por %p41, %p42
    %p44 = scmp.ne.s32.totalorder %s33, %s36
    %p45 = scmp.eq.s32.totalorder %s14, 1
    %p46 = por %p44, %p45
    %p47 = scmp.ne.s32.totalorder %s36, %s37
    %p48 = scmp.eq.s32.totalorder %s14, 0
    %p49 = por %p47, %p48
    %p50 = scmp.ne.s32.totalorder %s36, %s37
    %p51 = scmp.eq.s32.totalorder %s15, 1
    %p52 = por %p50, %p51
    %p54 = scmp.ne.s32.totalorder %s37, %s53
    %p55 = scmp.eq.s32.totalorder %s15, 0
    %p56 = por %p54, %p55
    %s58 = sadd.s32 %s57, 1
    %p61 = scmp.eq.s32.totalorder %s9, 1
    %p62 = scmp.ne.s32.totalorder %s57, %s59
    %p63 = scmp.eq.s32.totalorder %s9, 0
    %p64 = por %p62, %p63
    %p65 = scmp.ne.s32.totalorder %s57, %s59
    %p66 = scmp.eq.s32.totalorder %s14, 1
    %p67 = por %p65, %p66
    %p68 = scmp.ne.s32.totalorder %s59, %s60
    %p69 = scmp.eq.s32.totalorder %s14, 0
    %p70 = por %p68, %p69
    %p71 = scmp.ne.s32.totalorder %s59, %s60
    %p72 = scmp.eq.s32.totalorder %s15, 1
    %p73 = por %p71, %p72
    %p75 = scmp.ne.s32.totalorder %s60, %s74
    %p76 = scmp.eq.s32.totalorder %s15, 0
    %p77 = por %p75, %p76
    %s79 = sadd.s32 %s78, 1
    %p82 = scmp.eq.s32.totalorder %s9, 1
    %p83 = scmp.ne.s32.totalorder %s78, %s80
    %p84 = scmp.eq.s32.totalorder %s9, 0
    %p85 = por %p83, %p84
    %p86 = scmp.ne.s32.totalorder %s78, %s80
    %p87 = scmp.eq.s32.totalorder %s14, 1
    %p88 = por %p86, %p87
    %p89 = scmp.ne.s32.totalorder %s80, %s81
    %p90 = scmp.eq.s32.totalorder %s14, 0
    %p91 = por %p89, %p90
    %p92 = scmp.ne.s32.totalorder %s80, %s81
    %p93 = scmp.eq.s32.totalorder %s15, 1
    %p94 = por %p92, %p93
    %p96 = scmp.ne.s32.totalorder %s81, %s95
    %p97 = scmp.eq.s32.totalorder %s15, 0
    %p98 = por %p96, %p97
    %s99 = ssub.s32 %s16, %s28
    %s100 = ssub.s32 %s17, %s24
    %s101 = sor.u32 %s99, %s100
    %p102 = scmp.eq.s32.totalorder %s101, 0
    %s104 = sadd.s32 %s103, 1
    %s105 = scalar_select %p102, %s103, %s104
    %p108 = pneg %p102
    %p109 = scmp.eq.s32.totalorder %s9, 1
    %p110 = por %p108, %p109
    %p111 = scmp.ne.s32.totalorder %s103, %s106
    %p112 = scmp.eq.s32.totalorder %s9, 0
    %p113 = por %p111, %p112
    %p114 = scmp.ne.s32.totalorder %s103, %s106
    %p115 = scmp.eq.s32.totalorder %s14, 1
    %p116 = por %p114, %p115
    %p117 = scmp.ne.s32.totalorder %s106, %s107
    %p118 = scmp.eq.s32.totalorder %s14, 0
    %p119 = por %p117, %p118
    %p120 = scmp.ne.s32.totalorder %s106, %s107
    %p121 = scmp.eq.s32.totalorder %s15, 1
    %p122 = por %p120, %p121
    %p124 = scmp.ne.s32.totalorder %s107, %s123
    %p125 = scmp.eq.s32.totalorder %s15, 0
    %p126 = por %p124, %p125
    %p127 = scmp.le.s32.totalorder 1, %s9
    %p128 = scmp.lt.s32.totalorder %s9, 3
    %p129 = pnand %p127, %p128
    %p130 = pneg %p129
    // Predicated region
    $region9: #{relu_conv1x1_batchnorm.3} parent=5 // pred_check
      _
    $region10: #{relu_conv1x1_batchnorm.3} parent=5 // pred_check_branch
      %132 = sbr.rel (%p129) target = $region12
    $region11: #{relu_conv1x1_batchnorm.3} parent=5 // pred_region
      %s133 = ssub.s32 %s9, 1
      // Predicated region
      $region13: #{relu_conv1x1_batchnorm.3} parent=11 // pred_check
        %p134 = pneg %p70
      $region14: #{relu_conv1x1_batchnorm.3} parent=11 // pred_check_branch
        %136 = sbr.rel (%p134) target = $region16
      $region15: #{relu_conv1x1_batchnorm.3} parent=11 // pred_region
        _
      $region16: #{relu_conv1x1_batchnorm.3} parent=11 // pred_fallthru
        _
      // Predicated region
      $region17: #{relu_conv1x1_batchnorm.3} parent=11 // pred_check
        %p137 = pneg %p91
      $region18: #{relu_conv1x1_batchnorm.3} parent=11 // pred_check_branch
        %139 = sbr.rel (%p137) target = $region20
      $region19: #{relu_conv1x1_batchnorm.3} parent=11 // pred_region
        _
      $region20: #{relu_conv1x1_batchnorm.3} parent=11 // pred_fallthru
        _
    $region12: #{relu_conv1x1_batchnorm.3} parent=5 // pred_fallthru
      _
    %p140 = scmp.lt.s32.totalorder %s9, 2
    // Predicated region
    $region21: #{relu_conv1x1_batchnorm.3} parent=5 // pred_check
      %p141 = pneg %p140
    $region22: #{relu_conv1x1_batchnorm.3} parent=5 // pred_check_branch
      %143 = sbr.rel (%p141) target = $region24
    $region23: #{relu_conv1x1_batchnorm.3} parent=5 // pred_region
      // Predicated region
      $region25: #{relu_conv1x1_batchnorm.3} parent=23 // pred_check
        %p144 = pneg %p43
      $region26: #{relu_conv1x1_batchnorm.3} parent=23 // pred_check_branch
        %146 = sbr.rel (%p144) target = $region28
      $region27: #{relu_conv1x1_batchnorm.3} parent=23 // pred_region
        %s147 = smul.u32 2, %s17
        %p148 = scmp.lt.s32.totalorder %s16, 1
        %s149 = scalar_select %p148, %s16, 1
        %p150 = scmp.lt.s32.totalorder %s147, 1
        %s151 = scalar_select %p150, %s147, 1
        %s152 = smul.addr %s149, 32
        %s153 = sadd.s32 %s151, %s152
        %s154 = smul.addr %s153, 8
        %s155 = scalar_lea.vmem %s0, %s154
        %s156 = smul.u32 2, %s17
      $region28: #{relu_conv1x1_batchnorm.3} parent=23 // pred_fallthru
        _
    $region24: #{relu_conv1x1_batchnorm.3} parent=5 // pred_fallthru
      _
    %p157 = scmp.le.s32.totalorder 1, %s9
    %p158 = scmp.lt.s32.totalorder %s9, 3
    %p159 = pnand %p157, %p158
    %p160 = pneg %p159
    // Predicated region
    $region29: #{relu_conv1x1_batchnorm.3} parent=5 // pred_check
      _
    $region30: #{relu_conv1x1_batchnorm.3} parent=5 // pred_check_branch
      %162 = sbr.rel (%p159) target = $region32
    $region31: #{relu_conv1x1_batchnorm.3} parent=5 // pred_region
      %s163 = ssub.s32 %s9, 1
      %s164 = smul.u32 2, %s19
      %p165 = scmp.lt.s32.totalorder %s18, 1
      %s166 = scalar_select %p165, %s18, 1
      %p167 = scmp.lt.s32.totalorder %s164, 1
      %s168 = scalar_select %p167, %s164, 1
      %s169 = smul.addr %s166, 32
      %s170 = sadd.s32 %s168, %s169
      %s171 = smul.addr %s170, 8
      %s172 = scalar_lea.vmem %s0, %s171
      %p173 = pneg %p49
      %p174 = pneg %p46
      %p175 = pneg %p70
      %p176 = pneg %p67
      %p177 = pneg %p91
      %p178 = pneg %p88
      %p179 = pneg %p119
      %p180 = pneg %p116
      %s181 = smul.u32 2, %s19
      %p182 = scmp.lt.s32.totalorder %s18, 1
      %s183 = scalar_select %p182, %s18, 1
      %p184 = scmp.lt.s32.totalorder %s181, 1
      %s185 = scalar_select %p184, %s181, 1
      %s186 = smul.addr %s183, 32
      %s187 = sadd.s32 %s185, %s186
      %s188 = smul.addr %s187, 8
      %s189 = scalar_lea.vmem %s3, %s188
      %s190 = smul.u32 2, %s19
      %p191 = scmp.lt.s32.totalorder %s18, 1
      %s192 = scalar_select %p191, %s18, 1
      %p193 = scmp.lt.s32.totalorder %s190, 1
      %s194 = scalar_select %p193, %s190, 1
      %s195 = smul.addr %s192, 32
      %s196 = sadd.s32 %s194, %s195
      %s197 = smul.addr %s196, 8
      %s198 = scalar_lea.vmem %s0, %s197
      %s199 = smul.u32 2, %s19
      %s200 = smul.u32 2, %s19
      %p201 = scmp.lt.s32.totalorder %s18, 1
      %s202 = scalar_select %p201, %s18, 1
      %p203 = scmp.lt.s32.totalorder %s200, 1
      %s204 = scalar_select %p203, %s200, 1
      %s205 = smul.addr %s202, 32
      %s206 = sadd.s32 %s204, %s205
      %s207 = smul.addr %s206, 8
      %s208 = scalar_lea.vmem %s3, %s207
      %s209 = smul.u32 2, %s19
      %v210 = vld [vmem:[%s198] sm:$0xff]
      %v211 = vld [vmem:[%s198 + $0x8] sm:$0xff]
      %v212 = vld [vmem:[%s198 + $0x10] sm:$0xff]
      %v213 = vld [vmem:[%s198 + $0x18] sm:$0xff]
      %v214 = vld [vmem:[%s198 + $0x20] sm:$0xff]
      %v215 = vld [vmem:[%s198 + $0x28] sm:$0xff]
      %v216 = vld [vmem:[%s198 + $0x30] sm:$0xff]
      %v217 = vld [vmem:[%s198 + $0x38] sm:$0xff]
      %v218 = vld [vmem:[%s198 + $0x40] sm:$0xff]
      %v219 = vld [vmem:[%s198 + $0x48] sm:$0xff]
      %v220 = vld [vmem:[%s198 + $0x50] sm:$0xff]
      %v221 = vld [vmem:[%s198 + $0x58] sm:$0xff]
      %v222 = vld [vmem:[%s198 + $0x60] sm:$0xff]
      %v223 = vld [vmem:[%s198 + $0x68] sm:$0xff]
      %v224 = vld [vmem:[%s198 + $0x70] sm:$0xff]
      %v225 = vld [vmem:[%s198 + $0x78] sm:$0xff]
      %v226 = vld [vmem:[%s198 + $0x80] sm:$0xff]
      %v227 = vld [vmem:[%s198 + $0x88] sm:$0xff]
      %v228 = vld [vmem:[%s198 + $0x90] sm:$0xff]
      %v229 = vld [vmem:[%s198 + $0x98] sm:$0xff]
      %v230 = vld [vmem:[%s198 + $0xa0] sm:$0xff]
      %v231 = vld [vmem:[%s198 + $0xa8] sm:$0xff]
      %v232 = vld [vmem:[%s198 + $0xb0] sm:$0xff]
      %v233 = vld [vmem:[%s198 + $0xb8] sm:$0xff]
      %v234 = vld [vmem:[%s198 + $0xc0] sm:$0xff]
      %v235 = vld [vmem:[%s198 + $0xc8] sm:$0xff]
      %v236 = vld [vmem:[%s198 + $0xd0] sm:$0xff]
      %v237 = vld [vmem:[%s198 + $0xd8] sm:$0xff]
      %v238 = vld [vmem:[%s198 + $0xe0] sm:$0xff]
      %v239 = vld [vmem:[%s198 + $0xe8] sm:$0xff]
      %v240 = vld [vmem:[%s198 + $0xf0] sm:$0xff]
      %v241 = vld [vmem:[%s198 + $0xf8] sm:$0xff]
      %v242 = vld [vmem:[%s1] sm:$0xff]
      %v243 = vld [vmem:[%s1 + $0x8] sm:$0xff]
      %v244 = vld [vmem:[%s1 + $0x10] sm:$0xff]
      %v245 = vld [vmem:[%s1 + $0x18] sm:$0xff]
      %v246 = vld [vmem:[%s1 + $0x20] sm:$0xff]
      %v247 = vld [vmem:[%s1 + $0x28] sm:$0xff]
      %v248 = vld [vmem:[%s1 + $0x30] sm:$0xff]
      %v249 = vld [vmem:[%s1 + $0x38] sm:$0xff]
      %v250 = vld [vmem:[%s1 + $0x40] sm:$0xff]
      %v251 = vld [vmem:[%s1 + $0x48] sm:$0xff]
      %v252 = vld [vmem:[%s1 + $0x50] sm:$0xff]
      %v253 = vld [vmem:[%s1 + $0x58] sm:$0xff]
      %v254 = vld [vmem:[%s1 + $0x60] sm:$0xff]
      %v255 = vld [vmem:[%s1 + $0x68] sm:$0xff]
      %v256 = vld [vmem:[%s1 + $0x70] sm:$0xff]
      %v257 = vld [vmem:[%s1 + $0x78] sm:$0xff]
      %259 = vset.pattern.permute.xlu0 0
      %260 = vperm.xlu0 %259, %v242
      %v261 = vpop.permute.xlu0 %260
      %264 = vset.pattern.permute.xlu0 0
      %265 = vperm.xlu0 %264, %v243
      %v266 = vpop.permute.xlu0 %265
      %269 = vset.pattern.permute.xlu0 0
      %270 = vperm.xlu0 %269, %v244
      %v271 = vpop.permute.xlu0 %270
      %274 = vset.pattern.permute.xlu0 0
      %275 = vperm.xlu0 %274, %v245
      %v276 = vpop.permute.xlu0 %275
      %279 = vset.pattern.permute.xlu0 0
      %280 = vperm.xlu0 %279, %v246
      %v281 = vpop.permute.xlu0 %280
      %284 = vset.pattern.permute.xlu0 0
      %285 = vperm.xlu0 %284, %v247
      %v286 = vpop.permute.xlu0 %285
      %289 = vset.pattern.permute.xlu0 0
      %290 = vperm.xlu0 %289, %v248
      %v291 = vpop.permute.xlu0 %290
      %294 = vset.pattern.permute.xlu0 0
      %295 = vperm.xlu0 %294, %v249
      %v296 = vpop.permute.xlu0 %295
      %299 = vset.pattern.permute.xlu0 0
      %300 = vperm.xlu0 %299, %v250
      %v301 = vpop.permute.xlu0 %300
      %304 = vset.pattern.permute.xlu0 0
      %305 = vperm.xlu0 %304, %v251
      %v306 = vpop.permute.xlu0 %305
      %309 = vset.pattern.permute.xlu0 0
      %310 = vperm.xlu0 %309, %v252
      %v311 = vpop.permute.xlu0 %310
      %314 = vset.pattern.permute.xlu0 0
      %315 = vperm.xlu0 %314, %v253
      %v316 = vpop.permute.xlu0 %315
      %319 = vset.pattern.permute.xlu0 0
      %320 = vperm.xlu0 %319, %v254
      %v321 = vpop.permute.xlu0 %320
      %324 = vset.pattern.permute.xlu0 0
      %325 = vperm.xlu0 %324, %v255
      %v326 = vpop.permute.xlu0 %325
      %329 = vset.pattern.permute.xlu0 0
      %330 = vperm.xlu0 %329, %v256
      %v331 = vpop.permute.xlu0 %330
      %334 = vset.pattern.permute.xlu0 0
      %335 = vperm.xlu0 %334, %v257
      %v336 = vpop.permute.xlu0 %335
      %v338 = vmul.f32 %v210, %v261
      %v339 = vmul.f32 %v211, %v261
      %v340 = vmul.f32 %v212, %v266
      %v341 = vmul.f32 %v213, %v266
      %v342 = vmul.f32 %v214, %v271
      %v343 = vmul.f32 %v215, %v271
      %v344 = vmul.f32 %v216, %v276
      %v345 = vmul.f32 %v217, %v276
      %v346 = vmul.f32 %v218, %v281
      %v347 = vmul.f32 %v219, %v281
      %v348 = vmul.f32 %v220, %v286
      %v349 = vmul.f32 %v221, %v286
      %v350 = vmul.f32 %v222, %v291
      %v351 = vmul.f32 %v223, %v291
      %v352 = vmul.f32 %v224, %v296
      %v353 = vmul.f32 %v225, %v296
      %v354 = vmul.f32 %v226, %v301
      %v355 = vmul.f32 %v227, %v301
      %v356 = vmul.f32 %v228, %v306
      %v357 = vmul.f32 %v229, %v306
      %v358 = vmul.f32 %v230, %v311
      %v359 = vmul.f32 %v231, %v311
      %v360 = vmul.f32 %v232, %v316
      %v361 = vmul.f32 %v233, %v316
      %v362 = vmul.f32 %v234, %v321
      %v363 = vmul.f32 %v235, %v321
      %v364 = vmul.f32 %v236, %v326
      %v365 = vmul.f32 %v237, %v326
      %v366 = vmul.f32 %v238, %v331
      %v367 = vmul.f32 %v239, %v331
      %v368 = vmul.f32 %v240, %v336
      %v369 = vmul.f32 %v241, %v336
      %v370 = vld [vmem:[%s2] sm:$0xff]
      %v371 = vld [vmem:[%s2 + $0x8] sm:$0xff]
      %v372 = vld [vmem:[%s2 + $0x10] sm:$0xff]
      %v373 = vld [vmem:[%s2 + $0x18] sm:$0xff]
      %v374 = vld [vmem:[%s2 + $0x20] sm:$0xff]
      %v375 = vld [vmem:[%s2 + $0x28] sm:$0xff]
      %v376 = vld [vmem:[%s2 + $0x30] sm:$0xff]
      %v377 = vld [vmem:[%s2 + $0x38] sm:$0xff]
      %v378 = vld [vmem:[%s2 + $0x40] sm:$0xff]
      %v379 = vld [vmem:[%s2 + $0x48] sm:$0xff]
      %v380 = vld [vmem:[%s2 + $0x50] sm:$0xff]
      %v381 = vld [vmem:[%s2 + $0x58] sm:$0xff]
      %v382 = vld [vmem:[%s2 + $0x60] sm:$0xff]
      %v383 = vld [vmem:[%s2 + $0x68] sm:$0xff]
      %v384 = vld [vmem:[%s2 + $0x70] sm:$0xff]
      %v385 = vld [vmem:[%s2 + $0x78] sm:$0xff]
      %387 = vset.pattern.permute.xlu0 0
      %388 = vperm.xlu0 %387, %v370
      %v389 = vpop.permute.xlu0 %388
      %392 = vset.pattern.permute.xlu0 0
      %393 = vperm.xlu0 %392, %v371
      %v394 = vpop.permute.xlu0 %393
      %397 = vset.pattern.permute.xlu0 0
      %398 = vperm.xlu0 %397, %v372
      %v399 = vpop.permute.xlu0 %398
      %402 = vset.pattern.permute.xlu0 0
      %403 = vperm.xlu0 %402, %v373
      %v404 = vpop.permute.xlu0 %403
      %407 = vset.pattern.permute.xlu0 0
      %408 = vperm.xlu0 %407, %v374
      %v409 = vpop.permute.xlu0 %408
      %412 = vset.pattern.permute.xlu0 0
      %413 = vperm.xlu0 %412, %v375
      %v414 = vpop.permute.xlu0 %413
      %417 = vset.pattern.permute.xlu0 0
      %418 = vperm.xlu0 %417, %v376
      %v419 = vpop.permute.xlu0 %418
      %422 = vset.pattern.permute.xlu0 0
      %423 = vperm.xlu0 %422, %v377
      %v424 = vpop.permute.xlu0 %423
      %427 = vset.pattern.permute.xlu0 0
      %428 = vperm.xlu0 %427, %v378
      %v429 = vpop.permute.xlu0 %428
      %432 = vset.pattern.permute.xlu0 0
      %433 = vperm.xlu0 %432, %v379
      %v434 = vpop.permute.xlu0 %433
      %437 = vset.pattern.permute.xlu0 0
      %438 = vperm.xlu0 %437, %v380
      %v439 = vpop.permute.xlu0 %438
      %442 = vset.pattern.permute.xlu0 0
      %443 = vperm.xlu0 %442, %v381
      %v444 = vpop.permute.xlu0 %443
      %447 = vset.pattern.permute.xlu0 0
      %448 = vperm.xlu0 %447, %v382
      %v449 = vpop.permute.xlu0 %448
      %452 = vset.pattern.permute.xlu0 0
      %453 = vperm.xlu0 %452, %v383
      %v454 = vpop.permute.xlu0 %453
      %457 = vset.pattern.permute.xlu0 0
      %458 = vperm.xlu0 %457, %v384
      %v459 = vpop.permute.xlu0 %458
      %462 = vset.pattern.permute.xlu0 0
      %463 = vperm.xlu0 %462, %v385
      %v464 = vpop.permute.xlu0 %463
      %v466 = vadd.f32 %v338, %v389
      %v467 = vadd.f32 %v339, %v389
      %v468 = vadd.f32 %v340, %v394
      %v469 = vadd.f32 %v341, %v394
      %v470 = vadd.f32 %v342, %v399
      %v471 = vadd.f32 %v343, %v399
      %v472 = vadd.f32 %v344, %v404
      %v473 = vadd.f32 %v345, %v404
      %v474 = vadd.f32 %v346, %v409
      %v475 = vadd.f32 %v347, %v409
      %v476 = vadd.f32 %v348, %v414
      %v477 = vadd.f32 %v349, %v414
      %v478 = vadd.f32 %v350, %v419
      %v479 = vadd.f32 %v351, %v419
      %v480 = vadd.f32 %v352, %v424
      %v481 = vadd.f32 %v353, %v424
      %v482 = vadd.f32 %v354, %v429
      %v483 = vadd.f32 %v355, %v429
      %v484 = vadd.f32 %v356, %v434
      %v485 = vadd.f32 %v357, %v434
      %v486 = vadd.f32 %v358, %v439
      %v487 = vadd.f32 %v359, %v439
      %v488 = vadd.f32 %v360, %v444
      %v489 = vadd.f32 %v361, %v444
      %v490 = vadd.f32 %v362, %v449
      %v491 = vadd.f32 %v363, %v449
      %v492 = vadd.f32 %v364, %v454
      %v493 = vadd.f32 %v365, %v454
      %v494 = vadd.f32 %v366, %v459
      %v495 = vadd.f32 %v367, %v459
      %v496 = vadd.f32 %v368, %v464
      %v497 = vadd.f32 %v369, %v464
      %498 = vst [vmem:[%s208] sm:$0xff] %v466
      %499 = vst [vmem:[%s208 + $0x8] sm:$0xff] %v467
      %500 = vst [vmem:[%s208 + $0x10] sm:$0xff] %v468
      %501 = vst [vmem:[%s208 + $0x18] sm:$0xff] %v469
      %502 = vst [vmem:[%s208 + $0x20] sm:$0xff] %v470
      %503 = vst [vmem:[%s208 + $0x28] sm:$0xff] %v471
      %504 = vst [vmem:[%s208 + $0x30] sm:$0xff] %v472
      %505 = vst [vmem:[%s208 + $0x38] sm:$0xff] %v473
      %506 = vst [vmem:[%s208 + $0x40] sm:$0xff] %v474
      %507 = vst [vmem:[%s208 + $0x48] sm:$0xff] %v475
      %508 = vst [vmem:[%s208 + $0x50] sm:$0xff] %v476
      %509 = vst [vmem:[%s208 + $0x58] sm:$0xff] %v477
      %510 = vst [vmem:[%s208 + $0x60] sm:$0xff] %v478
      %511 = vst [vmem:[%s208 + $0x68] sm:$0xff] %v479
      %512 = vst [vmem:[%s208 + $0x70] sm:$0xff] %v480
      %513 = vst [vmem:[%s208 + $0x78] sm:$0xff] %v481
      %514 = vst [vmem:[%s208 + $0x80] sm:$0xff] %v482
      %515 = vst [vmem:[%s208 + $0x88] sm:$0xff] %v483
      %516 = vst [vmem:[%s208 + $0x90] sm:$0xff] %v484
      %517 = vst [vmem:[%s208 + $0x98] sm:$0xff] %v485
      %518 = vst [vmem:[%s208 + $0xa0] sm:$0xff] %v486
      %519 = vst [vmem:[%s208 + $0xa8] sm:$0xff] %v487
      %520 = vst [vmem:[%s208 + $0xb0] sm:$0xff] %v488
      %521 = vst [vmem:[%s208 + $0xb8] sm:$0xff] %v489
      %522 = vst [vmem:[%s208 + $0xc0] sm:$0xff] %v490
      %523 = vst [vmem:[%s208 + $0xc8] sm:$0xff] %v491
      %524 = vst [vmem:[%s208 + $0xd0] sm:$0xff] %v492
      %525 = vst [vmem:[%s208 + $0xd8] sm:$0xff] %v493
      %526 = vst [vmem:[%s208 + $0xe0] sm:$0xff] %v494
      %527 = vst [vmem:[%s208 + $0xe8] sm:$0xff] %v495
      %528 = vst [vmem:[%s208 + $0xf0] sm:$0xff] %v496
      %529 = vst [vmem:[%s208 + $0xf8] sm:$0xff] %v497
      %s530 = smul.u32 2, %s19
      %p531 = scmp.lt.s32.totalorder %s18, 1
      %s532 = scalar_select %p531, %s18, 1
      %p533 = scmp.lt.s32.totalorder %s530, 1
      %s534 = scalar_select %p533, %s530, 1
      %s535 = smul.addr %s532, 32
      %s536 = sadd.s32 %s534, %s535
      %s537 = smul.addr %s536, 8
      %s538 = scalar_lea.vmem %s3, %s537
      // Predicated region
      $region33: #{relu_conv1x1_batchnorm.3} parent=31 // pred_check
        %p539 = pneg %p116
      $region34: #{relu_conv1x1_batchnorm.3} parent=31 // pred_check_branch
        %541 = sbr.rel (%p539) target = $region36
      $region35: #{relu_conv1x1_batchnorm.3} parent=31 // pred_region
        %s542 = smul.u32 2, %s19
      $region36: #{relu_conv1x1_batchnorm.3} parent=31 // pred_fallthru
        _
    $region32: #{relu_conv1x1_batchnorm.3} parent=5 // pred_fallthru
      _
    %p543 = scmp.le.s32.totalorder 2, %s9
    // Predicated region
    $region37: #{relu_conv1x1_batchnorm.3} parent=5 // pred_check
      %p544 = pneg %p543
    $region38: #{relu_conv1x1_batchnorm.3} parent=5 // pred_check_branch
      %546 = sbr.rel (%p544) target = $region40
    $region39: #{relu_conv1x1_batchnorm.3} parent=5 // pred_region
      %s547 = ssub.s32 %s9, 2
      // Predicated region
      $region41: #{relu_conv1x1_batchnorm.3} parent=39 // pred_check
        %p548 = pneg %p122
      $region42: #{relu_conv1x1_batchnorm.3} parent=39 // pred_check_branch
        %550 = sbr.rel (%p548) target = $region44
      $region43: #{relu_conv1x1_batchnorm.3} parent=39 // pred_region
        %s551 = smul.u32 2, %s21
        %p552 = scmp.lt.s32.totalorder %s20, 1
        %s553 = scalar_select %p552, %s20, 1
        %p554 = scmp.lt.s32.totalorder %s551, 1
        %s555 = scalar_select %p554, %s551, 1
        %s556 = smul.addr %s553, 32
        %s557 = sadd.s32 %s555, %s556
        %s558 = smul.addr %s557, 8
        %s559 = scalar_lea.vmem %s3, %s558
      $region44: #{relu_conv1x1_batchnorm.3} parent=39 // pred_fallthru
        _
    $region40: #{relu_conv1x1_batchnorm.3} parent=5 // pred_fallthru
      _
  $region6: #{relu_conv1x1_batchnorm.3} parent=0 // loop_footer
    %s13 = sadd.s32 1, %s9
  $region7: #{relu_conv1x1_batchnorm.3} parent=0 // loop_footer_branch
    %8 = sbr.rel target = $region3
  $region8: #{relu_conv1x1_batchnorm.3} parent=0 // loop_exit
    _

// kernel: relu_conv1x1_batchnorm.2
$region0: #{relu_conv1x1_batchnorm.2}
  #allocation0 [shape = 'u32[]', space=smem, size = 0x4, offset = 0x4, fixed_abs, tag = 'smem constant byte address 0x4 - core index']
  #allocation1 [shape = 'u32[144,128]{1,0:T(1,128)}', space=vmem, size = 0x12000, scoped, tag = 'internal scratch']
  %s0 = inlined_call_operand.vmem [shape: bf16[128,320], index: 0, kind: input, shape index: {}]
  %s1 = inlined_call_operand.vmem [shape: f32[2,320,256], index: 1, kind: input, shape index: {}]
  %s2 = inlined_call_operand.vmem [shape: f32[2,128,256], index: 2, kind: output, shape index: {0}]
  %s3 = inlined_call_operand.vmem [shape: f32[128,1], index: 3, kind: output, shape index: {1}]
  %s4 = inlined_call_operand.vmem [shape: f32[128,1], index: 4, kind: output, shape index: {2}]
  %5 = xla_tuple %s2, %s3, %s4
  %s6 = sld [smem:[#allocation0]]
  $region61: #{relu_conv1x1_batchnorm.2} parent=0
    _
  %s8 = ssub.s32 1, %s6
  %s9 = scalar_select 0, %s8, %s6
  loop: start=0, step=1, limit=4
  $region2: #{relu_conv1x1_batchnorm.2} parent=0 // loop_pre_header
    _
  $region3: #{relu_conv1x1_batchnorm.2} parent=0 // loop_header
    %s11 = sphi 0, %s15
    %p12 = scmp.ge.s32.totalorder %s11, 4
    %s18 = sphi 0, %s30
    %s19 = sphi 0, %s26
    %s20 = sphi 0, %s18
    %s21 = sphi 0, %s19
    %s22 = sphi 0, %s20
    %s23 = sphi 0, %s21
    %s31 = sphi 0, %s31
    %s33 = sphi 0, %s31
    %s34 = sphi 0, %s33
    %s48 = sphi 0, %s34
    %s56 = sphi 0, %s58
    %s59 = sphi 0, %s56
    %s60 = sphi 0, %s59
    %s76 = sphi 0, %s60
    %s84 = sphi 0, %s86
    %s87 = sphi 0, %s84
    %s88 = sphi 0, %s87
    %s104 = sphi 0, %s88
    %s108 = sphi 0, %s108
    %s110 = sphi 0, %s108
    %s111 = sphi 0, %s110
    %s125 = sphi 0, %s111
    %s129 = sphi 0, %s129
    %s131 = sphi 0, %s129
    %s132 = sphi 0, %s131
    %s146 = sphi 0, %s132
  $region4: #{relu_conv1x1_batchnorm.2} parent=0 // loop_header_branch
    %14 = sbr.rel (%p12) target = $region8
  $region5: #{relu_conv1x1_batchnorm.2} parent=0 // loop_body
    %s16 = ssub.s32 %s11, 1
    %s17 = ssub.s32 %s11, 2
    %s24 = sadd.s32 1, %s19
    %p25 = scmp.ge.s32.totalorder %s24, 1
    %s26 = scalar_select %p25, 0, %s24
    %s27 = sadd.s32 1, %s18
    %s28 = scalar_select %p25, %s27, %s18
    %p29 = scmp.ge.s32.totalorder %s28, 2
    %s30 = scalar_select %p29, 0, %s28
    %s32 = sadd.s32 %s31, 1
    %p35 = scmp.eq.s32.totalorder %s11, 1
    %p36 = scmp.ne.s32.totalorder %s31, %s33
    %p37 = scmp.eq.s32.totalorder %s11, 0
    %p38 = por %p36, %p37
    %p39 = scmp.ne.s32.totalorder %s31, %s33
    %p40 = scmp.eq.s32.totalorder %s16, 1
    %p41 = por %p39, %p40
    %p42 = scmp.ne.s32.totalorder %s33, %s34
    %p43 = scmp.eq.s32.totalorder %s16, 0
    %p44 = por %p42, %p43
    %p45 = scmp.ne.s32.totalorder %s33, %s34
    %p46 = scmp.eq.s32.totalorder %s17, 1
    %p47 = por %p45, %p46
    %p49 = scmp.ne.s32.totalorder %s34, %s48
    %p50 = scmp.eq.s32.totalorder %s17, 0
    %p51 = por %p49, %p50
    %s52 = ssub.s32 %s18, %s30
    %s53 = ssub.s32 %s19, %s26
    %s54 = sor.u32 %s52, %s53
    %p55 = scmp.eq.s32.totalorder %s54, 0
    %s57 = sadd.s32 %s56, 1
    %s58 = scalar_select %p55, %s56, %s57
    %p61 = pneg %p55
    %p62 = scmp.eq.s32.totalorder %s11, 1
    %p63 = por %p61, %p62
    %p64 = scmp.ne.s32.totalorder %s56, %s59
    %p65 = scmp.eq.s32.totalorder %s11, 0
    %p66 = por %p64, %p65
    %p67 = scmp.ne.s32.totalorder %s56, %s59
    %p68 = scmp.eq.s32.totalorder %s16, 1
    %p69 = por %p67, %p68
    %p70 = scmp.ne.s32.totalorder %s59, %s60
    %p71 = scmp.eq.s32.totalorder %s16, 0
    %p72 = por %p70, %p71
    %p73 = scmp.ne.s32.totalorder %s59, %s60
    %p74 = scmp.eq.s32.totalorder %s17, 1
    %p75 = por %p73, %p74
    %p77 = scmp.ne.s32.totalorder %s60, %s76
    %p78 = scmp.eq.s32.totalorder %s17, 0
    %p79 = por %p77, %p78
    %s80 = ssub.s32 %s18, %s30
    %s81 = ssub.s32 %s19, %s26
    %s82 = sor.u32 %s80, %s81
    %p83 = scmp.eq.s32.totalorder %s82, 0
    %s85 = sadd.s32 %s84, 1
    %s86 = scalar_select %p83, %s84, %s85
    %p89 = pneg %p83
    %p90 = scmp.eq.s32.totalorder %s11, 1
    %p91 = por %p89, %p90
    %p92 = scmp.ne.s32.totalorder %s84, %s87
    %p93 = scmp.eq.s32.totalorder %s11, 0
    %p94 = por %p92, %p93
    %p95 = scmp.ne.s32.totalorder %s84, %s87
    %p96 = scmp.eq.s32.totalorder %s16, 1
    %p97 = por %p95, %p96
    %p98 = scmp.ne.s32.totalorder %s87, %s88
    %p99 = scmp.eq.s32.totalorder %s16, 0
    %p100 = por %p98, %p99
    %p101 = scmp.ne.s32.totalorder %s87, %s88
    %p102 = scmp.eq.s32.totalorder %s17, 1
    %p103 = por %p101, %p102
    %p105 = scmp.ne.s32.totalorder %s88, %s104
    %p106 = scmp.eq.s32.totalorder %s17, 0
    %p107 = por %p105, %p106
    %s109 = sadd.s32 %s108, 1
    %p112 = scmp.eq.s32.totalorder %s11, 1
    %p113 = scmp.ne.s32.totalorder %s108, %s110
    %p114 = scmp.eq.s32.totalorder %s11, 0
    %p115 = por %p113, %p114
    %p116 = scmp.ne.s32.totalorder %s108, %s110
    %p117 = scmp.eq.s32.totalorder %s16, 1
    %p118 = por %p116, %p117
    %p119 = scmp.ne.s32.totalorder %s110, %s111
    %p120 = scmp.eq.s32.totalorder %s16, 0
    %p121 = por %p119, %p120
    %p122 = scmp.ne.s32.totalorder %s110, %s111
    %p123 = scmp.eq.s32.totalorder %s17, 1
    %p124 = por %p122, %p123
    %p126 = scmp.ne.s32.totalorder %s111, %s125
    %p127 = scmp.eq.s32.totalorder %s17, 0
    %p128 = por %p126, %p127
    %s130 = sadd.s32 %s129, 1
    %p133 = scmp.eq.s32.totalorder %s11, 1
    %p134 = scmp.ne.s32.totalorder %s129, %s131
    %p135 = scmp.eq.s32.totalorder %s11, 0
    %p136 = por %p134, %p135
    %p137 = scmp.ne.s32.totalorder %s129, %s131
    %p138 = scmp.eq.s32.totalorder %s16, 1
    %p139 = por %p137, %p138
    %p140 = scmp.ne.s32.totalorder %s131, %s132
    %p141 = scmp.eq.s32.totalorder %s16, 0
    %p142 = por %p140, %p141
    %p143 = scmp.ne.s32.totalorder %s131, %s132
    %p144 = scmp.eq.s32.totalorder %s17, 1
    %p145 = por %p143, %p144
    %p147 = scmp.ne.s32.totalorder %s132, %s146
    %p148 = scmp.eq.s32.totalorder %s17, 0
    %p149 = por %p147, %p148
    %p150 = scmp.le.s32.totalorder 1, %s11
    %p151 = scmp.lt.s32.totalorder %s11, 3
    %p152 = pnand %p150, %p151
    %p153 = pneg %p152
    // Predicated region
    $region9: #{relu_conv1x1_batchnorm.2} parent=5 // pred_check
      _
    $region10: #{relu_conv1x1_batchnorm.2} parent=5 // pred_check_branch
      %155 = sbr.rel (%p152) target = $region12
    $region11: #{relu_conv1x1_batchnorm.2} parent=5 // pred_region
      %s156 = ssub.s32 %s11, 1
      // Predicated region
      $region13: #{relu_conv1x1_batchnorm.2} parent=11 // pred_check
        %p157 = pneg %p44
      $region14: #{relu_conv1x1_batchnorm.2} parent=11 // pred_check_branch
        %159 = sbr.rel (%p157) target = $region16
      $region15: #{relu_conv1x1_batchnorm.2} parent=11 // pred_region
        _
      $region16: #{relu_conv1x1_batchnorm.2} parent=11 // pred_fallthru
        _
    $region12: #{relu_conv1x1_batchnorm.2} parent=5 // pred_fallthru
      _
    %p160 = scmp.lt.s32.totalorder %s11, 2
    // Predicated region
    $region17: #{relu_conv1x1_batchnorm.2} parent=5 // pred_check
      %p161 = pneg %p160
    $region18: #{relu_conv1x1_batchnorm.2} parent=5 // pred_check_branch
      %163 = sbr.rel (%p161) target = $region20
    $region19: #{relu_conv1x1_batchnorm.2} parent=5 // pred_region
      // Predicated region
      $region21: #{relu_conv1x1_batchnorm.2} parent=19 // pred_check
        %p164 = pneg %p66
      $region22: #{relu_conv1x1_batchnorm.2} parent=19 // pred_check_branch
        %166 = sbr.rel (%p164) target = $region24
      $region23: #{relu_conv1x1_batchnorm.2} parent=19 // pred_region
        %s167 = smul.u32 2, %s19
        %p168 = scmp.lt.s32.totalorder %s18, 1
        %s169 = scalar_select %p168, %s18, 1
        %p170 = scmp.lt.s32.totalorder %s167, 1
        %s171 = scalar_select %p170, %s167, 1
        %s172 = smul.addr %s169, 80
        %s173 = sadd.s32 %s171, %s172
        %s174 = smul.addr %s173, 8
        %s175 = scalar_lea.vmem %s1, %s174
        %s176 = smul.u32 2, %s19
      $region24: #{relu_conv1x1_batchnorm.2} parent=19 // pred_fallthru
        _
    $region20: #{relu_conv1x1_batchnorm.2} parent=5 // pred_fallthru
      _
    %p177 = scmp.le.s32.totalorder 1, %s11
    %p178 = scmp.lt.s32.totalorder %s11, 3
    %p179 = pnand %p177, %p178
    %p180 = pneg %p179
    // Predicated region
    $region25: #{relu_conv1x1_batchnorm.2} parent=5 // pred_check
      _
    $region26: #{relu_conv1x1_batchnorm.2} parent=5 // pred_check_branch
      %182 = sbr.rel (%p179) target = $region28
    $region27: #{relu_conv1x1_batchnorm.2} parent=5 // pred_region
      %s183 = ssub.s32 %s11, 1
      %p184 = pneg %p44
      %p185 = pneg %p41
      %s186 = smul.u32 2, %s21
      %p187 = scmp.lt.s32.totalorder %s20, 1
      %s188 = scalar_select %p187, %s20, 1
      %p189 = scmp.lt.s32.totalorder %s186, 1
      %s190 = scalar_select %p189, %s186, 1
      %s191 = smul.addr %s188, 80
      %s192 = sadd.s32 %s190, %s191
      %s193 = smul.addr %s192, 8
      %s194 = scalar_lea.vmem %s1, %s193
      %p195 = pneg %p72
      %p196 = pneg %p69
      %p197 = pneg %p100
      %p198 = pneg %p97
      %s199 = smul.u32 2, %s21
      %p200 = scmp.lt.s32.totalorder %s20, 1
      %s201 = scalar_select %p200, %s20, 1
      %p202 = scmp.lt.s32.totalorder %s199, 1
      %s203 = scalar_select %p202, %s199, 1
      %s204 = smul.addr %s201, 32
      %s205 = sadd.s32 %s203, %s204
      %s206 = smul.addr %s205, 8
      %s207 = scalar_lea.vmem %s2, %s206
      %p208 = pneg %p121
      %p209 = pneg %p118
      %p210 = pneg %p142
      %p211 = pneg %p139
      %s212 = smul.u32 2, %s21
      %p213 = scmp.lt.s32.totalorder %s20, 1
      %s214 = scalar_select %p213, %s20, 1
      %p215 = scmp.lt.s32.totalorder %s212, 1
      %s216 = scalar_select %p215, %s212, 1
      %s217 = smul.addr %s214, 80
      %s218 = sadd.s32 %s216, %s217
      %s219 = smul.addr %s218, 8
      %s220 = scalar_lea.vmem %s1, %s219
      %s221 = smul.u32 2, %s21
      %s222 = smul.u32 2, %s21
      %p223 = scmp.lt.s32.totalorder %s20, 1
      %s224 = scalar_select %p223, %s20, 1
      %p225 = scmp.lt.s32.totalorder %s222, 1
      %s226 = scalar_select %p225, %s222, 1
      %s227 = smul.addr %s224, 32
      %s228 = sadd.s32 %s226, %s227
      %s229 = smul.addr %s228, 8
      %s230 = scalar_lea.vmem %s2, %s229
      %s231 = smul.u32 2, %s21
      %p233 = scmp.eq.s32.totalorder %s20, 0
      %p234 = scmp.eq.s32.totalorder %s21, 0
      %p235 = pnand %p233, %p234
      %p236 = pneg %p235
      // Predicated region
      $region29: #{relu_conv1x1_batchnorm.2} parent=27 // pred_check
        _
      $region30: #{relu_conv1x1_batchnorm.2} parent=27 // pred_check_branch
        %238 = sbr.rel (%p235) target = $region32
      $region31: #{relu_conv1x1_batchnorm.2} parent=27 // pred_region
        %vm239 = vcmask 7168
        %240 = vst.msk [vmem:[%s3] sm:$0xff] %vm239, 0.0
        %241 = vst.msk [vmem:[%s3 + $0x8] sm:$0xff] %vm239, 0.0
        %242 = vst.msk [vmem:[%s3 + $0x10] sm:$0xff] %vm239, 0.0
        %243 = vst.msk [vmem:[%s3 + $0x18] sm:$0xff] %vm239, 0.0
        %244 = vst.msk [vmem:[%s3 + $0x20] sm:$0xff] %vm239, 0.0
        %245 = vst.msk [vmem:[%s3 + $0x28] sm:$0xff] %vm239, 0.0
        %246 = vst.msk [vmem:[%s3 + $0x30] sm:$0xff] %vm239, 0.0
        %247 = vst.msk [vmem:[%s3 + $0x38] sm:$0xff] %vm239, 0.0
        %248 = vst.msk [vmem:[%s3 + $0x40] sm:$0xff] %vm239, 0.0
        %249 = vst.msk [vmem:[%s3 + $0x48] sm:$0xff] %vm239, 0.0
        %250 = vst.msk [vmem:[%s3 + $0x50] sm:$0xff] %vm239, 0.0
        %251 = vst.msk [vmem:[%s3 + $0x58] sm:$0xff] %vm239, 0.0
        %252 = vst.msk [vmem:[%s3 + $0x60] sm:$0xff] %vm239, 0.0
        %253 = vst.msk [vmem:[%s3 + $0x68] sm:$0xff] %vm239, 0.0
        %254 = vst.msk [vmem:[%s3 + $0x70] sm:$0xff] %vm239, 0.0
        %255 = vst.msk [vmem:[%s3 + $0x78] sm:$0xff] %vm239, 0.0
        %256 = vst.msk [vmem:[%s4] sm:$0xff] %vm239, 0.0
        %257 = vst.msk [vmem:[%s4 + $0x8] sm:$0xff] %vm239, 0.0
        %258 = vst.msk [vmem:[%s4 + $0x10] sm:$0xff] %vm239, 0.0
        %259 = vst.msk [vmem:[%s4 + $0x18] sm:$0xff] %vm239, 0.0
        %260 = vst.msk [vmem:[%s4 + $0x20] sm:$0xff] %vm239, 0.0
        %261 = vst.msk [vmem:[%s4 + $0x28] sm:$0xff] %vm239, 0.0
        %262 = vst.msk [vmem:[%s4 + $0x30] sm:$0xff] %vm239, 0.0
        %263 = vst.msk [vmem:[%s4 + $0x38] sm:$0xff] %vm239, 0.0
        %264 = vst.msk [vmem:[%s4 + $0x40] sm:$0xff] %vm239, 0.0
        %265 = vst.msk [vmem:[%s4 + $0x48] sm:$0xff] %vm239, 0.0
        %266 = vst.msk [vmem:[%s4 + $0x50] sm:$0xff] %vm239, 0.0
        %267 = vst.msk [vmem:[%s4 + $0x58] sm:$0xff] %vm239, 0.0
        %268 = vst.msk [vmem:[%s4 + $0x60] sm:$0xff] %vm239, 0.0
        %269 = vst.msk [vmem:[%s4 + $0x68] sm:$0xff] %vm239, 0.0
        %270 = vst.msk [vmem:[%s4 + $0x70] sm:$0xff] %vm239, 0.0
        %271 = vst.msk [vmem:[%s4 + $0x78] sm:$0xff] %vm239, 0.0
      $region32: #{relu_conv1x1_batchnorm.2} parent=27 // pred_fallthru
        _
      %v272 = vld [vmem:[%s220] sm:$0xff]
      %v273 = vld [vmem:[%s220 + $0x8] sm:$0xff]
      %v274 = vld [vmem:[%s220 + $0x10] sm:$0xff]
      %v275 = vld [vmem:[%s220 + $0x18] sm:$0xff]
      %v276 = vld [vmem:[%s220 + $0x20] sm:$0xff]
      %v277 = vld [vmem:[%s220 + $0x28] sm:$0xff]
      %v278 = vld [vmem:[%s220 + $0x30] sm:$0xff]
      %v279 = vld [vmem:[%s220 + $0x38] sm:$0xff]
      %v280 = vld [vmem:[%s220 + $0x40] sm:$0xff]
      %v281 = vld [vmem:[%s220 + $0x48] sm:$0xff]
      %v282 = vld [vmem:[%s220 + $0x50] sm:$0xff]
      %v283 = vld [vmem:[%s220 + $0x58] sm:$0xff]
      %v284 = vld [vmem:[%s220 + $0x60] sm:$0xff]
      %v285 = vld [vmem:[%s220 + $0x68] sm:$0xff]
      %v286 = vld [vmem:[%s220 + $0x70] sm:$0xff]
      %v287 = vld [vmem:[%s220 + $0x78] sm:$0xff]
      %v288 = vld [vmem:[%s220 + $0x80] sm:$0xff]
      %v289 = vld [vmem:[%s220 + $0x88] sm:$0xff]
      %v290 = vld [vmem:[%s220 + $0x90] sm:$0xff]
      %v291 = vld [vmem:[%s220 + $0x98] sm:$0xff]
      %v292 = vld [vmem:[%s220 + $0xa0] sm:$0xff]
      %v293 = vld [vmem:[%s220 + $0xa8] sm:$0xff]
      %v294 = vld [vmem:[%s220 + $0xb0] sm:$0xff]
      %v295 = vld [vmem:[%s220 + $0xb8] sm:$0xff]
      %v296 = vld [vmem:[%s220 + $0xc0] sm:$0xff]
      %v297 = vld [vmem:[%s220 + $0xc8] sm:$0xff]
      %v298 = vld [vmem:[%s220 + $0xd0] sm:$0xff]
      %v299 = vld [vmem:[%s220 + $0xd8] sm:$0xff]
      %v300 = vld [vmem:[%s220 + $0xe0] sm:$0xff]
      %v301 = vld [vmem:[%s220 + $0xe8] sm:$0xff]
      %v302 = vld [vmem:[%s220 + $0xf0] sm:$0xff]
      %v303 = vld [vmem:[%s220 + $0xf8] sm:$0xff]
      %v304 = vld [vmem:[%s220 + $0x100] sm:$0xff]
      %v305 = vld [vmem:[%s220 + $0x108] sm:$0xff]
      %v306 = vld [vmem:[%s220 + $0x110] sm:$0xff]
      %v307 = vld [vmem:[%s220 + $0x118] sm:$0xff]
      %v308 = vld [vmem:[%s220 + $0x120] sm:$0xff]
      %v309 = vld [vmem:[%s220 + $0x128] sm:$0xff]
      %v310 = vld [vmem:[%s220 + $0x130] sm:$0xff]
      %v311 = vld [vmem:[%s220 + $0x138] sm:$0xff]
      %v312 = vld [vmem:[%s220 + $0x140] sm:$0xff]
      %v313 = vld [vmem:[%s220 + $0x148] sm:$0xff]
      %v314 = vld [vmem:[%s220 + $0x150] sm:$0xff]
      %v315 = vld [vmem:[%s220 + $0x158] sm:$0xff]
      %v316 = vld [vmem:[%s220 + $0x160] sm:$0xff]
      %v317 = vld [vmem:[%s220 + $0x168] sm:$0xff]
      %v318 = vld [vmem:[%s220 + $0x170] sm:$0xff]
      %v319 = vld [vmem:[%s220 + $0x178] sm:$0xff]
      %v320 = vld [vmem:[%s220 + $0x180] sm:$0xff]
      %v321 = vld [vmem:[%s220 + $0x188] sm:$0xff]
      %v322 = vld [vmem:[%s220 + $0x190] sm:$0xff]
      %v323 = vld [vmem:[%s220 + $0x198] sm:$0xff]
      %v324 = vld [vmem:[%s220 + $0x1a0] sm:$0xff]
      %v325 = vld [vmem:[%s220 + $0x1a8] sm:$0xff]
      %v326 = vld [vmem:[%s220 + $0x1b0] sm:$0xff]
      %v327 = vld [vmem:[%s220 + $0x1b8] sm:$0xff]
      %v328 = vld [vmem:[%s220 + $0x1c0] sm:$0xff]
      %v329 = vld [vmem:[%s220 + $0x1c8] sm:$0xff]
      %v330 = vld [vmem:[%s220 + $0x1d0] sm:$0xff]
      %v331 = vld [vmem:[%s220 + $0x1d8] sm:$0xff]
      %v332 = vld [vmem:[%s220 + $0x1e0] sm:$0xff]
      %v333 = vld [vmem:[%s220 + $0x1e8] sm:$0xff]
      %v334 = vld [vmem:[%s220 + $0x1f0] sm:$0xff]
      %v335 = vld [vmem:[%s220 + $0x1f8] sm:$0xff]
      %v336 = vld [vmem:[%s220 + $0x200] sm:$0xff]
      %v337 = vld [vmem:[%s220 + $0x208] sm:$0xff]
      %v338 = vld [vmem:[%s220 + $0x210] sm:$0xff]
      %v339 = vld [vmem:[%s220 + $0x218] sm:$0xff]
      %v340 = vld [vmem:[%s220 + $0x220] sm:$0xff]
      %v341 = vld [vmem:[%s220 + $0x228] sm:$0xff]
      %v342 = vld [vmem:[%s220 + $0x230] sm:$0xff]
      %v343 = vld [vmem:[%s220 + $0x238] sm:$0xff]
      %v344 = vld [vmem:[%s220 + $0x240] sm:$0xff]
      %v345 = vld [vmem:[%s220 + $0x248] sm:$0xff]
      %v346 = vld [vmem:[%s220 + $0x250] sm:$0xff]
      %v347 = vld [vmem:[%s220 + $0x258] sm:$0xff]
      %v348 = vld [vmem:[%s220 + $0x260] sm:$0xff]
      %v349 = vld [vmem:[%s220 + $0x268] sm:$0xff]
      %v350 = vld [vmem:[%s220 + $0x270] sm:$0xff]
      %v351 = vld [vmem:[%s220 + $0x278] sm:$0xff]
      %v352 = vmax.f32 %v272, 0.0
      %v353 = vmax.f32 %v273, 0.0
      %v354 = vmax.f32 %v274, 0.0
      %v355 = vmax.f32 %v275, 0.0
      %v356 = vmax.f32 %v276, 0.0
      %v357 = vmax.f32 %v277, 0.0
      %v358 = vmax.f32 %v278, 0.0
      %v359 = vmax.f32 %v279, 0.0
      %v360 = vmax.f32 %v280, 0.0
      %v361 = vmax.f32 %v281, 0.0
      %v362 = vmax.f32 %v282, 0.0
      %v363 = vmax.f32 %v283, 0.0
      %v364 = vmax.f32 %v284, 0.0
      %v365 = vmax.f32 %v285, 0.0
      %v366 = vmax.f32 %v286, 0.0
      %v367 = vmax.f32 %v287, 0.0
      %v368 = vmax.f32 %v288, 0.0
      %v369 = vmax.f32 %v289, 0.0
      %v370 = vmax.f32 %v290, 0.0
      %v371 = vmax.f32 %v291, 0.0
      %v372 = vmax.f32 %v292, 0.0
      %v373 = vmax.f32 %v293, 0.0
      %v374 = vmax.f32 %v294, 0.0
      %v375 = vmax.f32 %v295, 0.0
      %v376 = vmax.f32 %v296, 0.0
      %v377 = vmax.f32 %v297, 0.0
      %v378 = vmax.f32 %v298, 0.0
      %v379 = vmax.f32 %v299, 0.0
      %v380 = vmax.f32 %v300, 0.0
      %v381 = vmax.f32 %v301, 0.0
      %v382 = vmax.f32 %v302, 0.0
      %v383 = vmax.f32 %v303, 0.0
      %v384 = vmax.f32 %v304, 0.0
      %v385 = vmax.f32 %v305, 0.0
      %v386 = vmax.f32 %v306, 0.0
      %v387 = vmax.f32 %v307, 0.0
      %v388 = vmax.f32 %v308, 0.0
      %v389 = vmax.f32 %v309, 0.0
      %v390 = vmax.f32 %v310, 0.0
      %v391 = vmax.f32 %v311, 0.0
      %v392 = vmax.f32 %v312, 0.0
      %v393 = vmax.f32 %v313, 0.0
      %v394 = vmax.f32 %v314, 0.0
      %v395 = vmax.f32 %v315, 0.0
      %v396 = vmax.f32 %v316, 0.0
      %v397 = vmax.f32 %v317, 0.0
      %v398 = vmax.f32 %v318, 0.0
      %v399 = vmax.f32 %v319, 0.0
      %v400 = vmax.f32 %v320, 0.0
      %v401 = vmax.f32 %v321, 0.0
      %v402 = vmax.f32 %v322, 0.0
      %v403 = vmax.f32 %v323, 0.0
      %v404 = vmax.f32 %v324, 0.0
      %v405 = vmax.f32 %v325, 0.0
      %v406 = vmax.f32 %v326, 0.0
      %v407 = vmax.f32 %v327, 0.0
      %v408 = vmax.f32 %v328, 0.0
      %v409 = vmax.f32 %v329, 0.0
      %v410 = vmax.f32 %v330, 0.0
      %v411 = vmax.f32 %v331, 0.0
      %v412 = vmax.f32 %v332, 0.0
      %v413 = vmax.f32 %v333, 0.0
      %v414 = vmax.f32 %v334, 0.0
      %v415 = vmax.f32 %v335, 0.0
      %v416 = vmax.f32 %v336, 0.0
      %v417 = vmax.f32 %v337, 0.0
      %v418 = vmax.f32 %v338, 0.0
      %v419 = vmax.f32 %v339, 0.0
      %v420 = vmax.f32 %v340, 0.0
      %v421 = vmax.f32 %v341, 0.0
      %v422 = vmax.f32 %v342, 0.0
      %v423 = vmax.f32 %v343, 0.0
      %v424 = vmax.f32 %v344, 0.0
      %v425 = vmax.f32 %v345, 0.0
      %v426 = vmax.f32 %v346, 0.0
      %v427 = vmax.f32 %v347, 0.0
      %v428 = vmax.f32 %v348, 0.0
      %v429 = vmax.f32 %v349, 0.0
      %v430 = vmax.f32 %v350, 0.0
      %v431 = vmax.f32 %v351, 0.0
      %v432 = vpack.c.bf16 %v354, %v352
      %v433 = vpack.c.bf16 %v355, %v353
      %v434 = vpack.c.bf16 %v358, %v356
      %v435 = vpack.c.bf16 %v359, %v357
      %v436 = vpack.c.bf16 %v362, %v360
      %v437 = vpack.c.bf16 %v363, %v361
      %v438 = vpack.c.bf16 %v366, %v364
      %v439 = vpack.c.bf16 %v367, %v365
      %v440 = vpack.c.bf16 %v370, %v368
      %v441 = vpack.c.bf16 %v371, %v369
      %v442 = vpack.c.bf16 %v374, %v372
      %v443 = vpack.c.bf16 %v375, %v373
      %v444 = vpack.c.bf16 %v378, %v376
      %v445 = vpack.c.bf16 %v379, %v377
      %v446 = vpack.c.bf16 %v382, %v380
      %v447 = vpack.c.bf16 %v383, %v381
      %v448 = vpack.c.bf16 %v386, %v384
      %v449 = vpack.c.bf16 %v387, %v385
      %v450 = vpack.c.bf16 %v390, %v388
      %v451 = vpack.c.bf16 %v391, %v389
      %v452 = vpack.c.bf16 %v394, %v392
      %v453 = vpack.c.bf16 %v395, %v393
      %v454 = vpack.c.bf16 %v398, %v396
      %v455 = vpack.c.bf16 %v399, %v397
      %v456 = vpack.c.bf16 %v402, %v400
      %v457 = vpack.c.bf16 %v403, %v401
      %v458 = vpack.c.bf16 %v406, %v404
      %v459 = vpack.c.bf16 %v407, %v405
      %v460 = vpack.c.bf16 %v410, %v408
      %v461 = vpack.c.bf16 %v411, %v409
      %v462 = vpack.c.bf16 %v414, %v412
      %v463 = vpack.c.bf16 %v415, %v413
      %v464 = vpack.c.bf16 %v418, %v416
      %v465 = vpack.c.bf16 %v419, %v417
      %v466 = vpack.c.bf16 %v422, %v420
      %v467 = vpack.c.bf16 %v423, %v421
      %v468 = vpack.c.bf16 %v426, %v424
      %v469 = vpack.c.bf16 %v427, %v425
      %v470 = vpack.c.bf16 %v430, %v428
      %v471 = vpack.c.bf16 %v431, %v429
      %v472 = vld [vmem:[%s0] sm:$0xff]
      %v473 = vld [vmem:[%s0 + $0x8] sm:$0xf]
      %v474 = vld [vmem:[%s0 + $0xc] sm:$0xff]
      %v475 = vld [vmem:[%s0 + $0x14] sm:$0xf]
      %v476 = vld [vmem:[%s0 + $0x18] sm:$0xff]
      %v477 = vld [vmem:[%s0 + $0x20] sm:$0xf]
      %v478 = vld [vmem:[%s0 + $0x24] sm:$0xff]
      %v479 = vld [vmem:[%s0 + $0x2c] sm:$0xf]
      %v480 = vld [vmem:[%s0 + $0x30] sm:$0xff]
      %v481 = vld [vmem:[%s0 + $0x38] sm:$0xf]
      %v482 = vld [vmem:[%s0 + $0x3c] sm:$0xff]
      %v483 = vld [vmem:[%s0 + $0x44] sm:$0xf]
      %v484 = vld [vmem:[%s0 + $0x48] sm:$0xff]
      %v485 = vld [vmem:[%s0 + $0x50] sm:$0xf]
      %v486 = vld [vmem:[%s0 + $0x54] sm:$0xff]
      %v487 = vld [vmem:[%s0 + $0x5c] sm:$0xf]
      %v488 = vld [vmem:[%s0 + $0x60] sm:$0xff]
      %v489 = vld [vmem:[%s0 + $0x68] sm:$0xf]
      %v490 = vld [vmem:[%s0 + $0x6c] sm:$0xff]
      %v491 = vld [vmem:[%s0 + $0x74] sm:$0xf]
      %v492 = vld [vmem:[%s0 + $0x78] sm:$0xff]
      %v493 = vld [vmem:[%s0 + $0x80] sm:$0xf]
      %v494 = vld [vmem:[%s0 + $0x84] sm:$0xff]
      %v495 = vld [vmem:[%s0 + $0x8c] sm:$0xf]
      %v496 = vld [vmem:[%s0 + $0x90] sm:$0xff]
      %v497 = vld [vmem:[%s0 + $0x98] sm:$0xf]
      %v498 = vld [vmem:[%s0 + $0x9c] sm:$0xff]
      %v499 = vld [vmem:[%s0 + $0xa4] sm:$0xf]
      %v500 = vld [vmem:[%s0 + $0xa8] sm:$0xff]
      %v501 = vld [vmem:[%s0 + $0xb0] sm:$0xf]
      %v502 = vld [vmem:[%s0 + $0xb4] sm:$0xff]
      %v503 = vld [vmem:[%s0 + $0xbc] sm:$0xf]
      %v536 = vunpack.c.l.b16 %v472
      %v537 = vunpack.c.h.b16 %v472
      %v538 = vunpack.c.l.b16 %v473
      %v539 = vunpack.c.l.b16 %v474
      %v540 = vunpack.c.h.b16 %v474
      %v541 = vunpack.c.l.b16 %v475
      %v542 = vunpack.c.l.b16 %v476
      %v543 = vunpack.c.h.b16 %v476
      %v544 = vunpack.c.l.b16 %v477
      %v545 = vunpack.c.l.b16 %v478
      %v546 = vunpack.c.h.b16 %v478
      %v547 = vunpack.c.l.b16 %v479
      %v548 = vunpack.c.l.b16 %v480
      %v549 = vunpack.c.h.b16 %v480
      %v550 = vunpack.c.l.b16 %v481
      %v551 = vunpack.c.l.b16 %v482
      %v552 = vunpack.c.h.b16 %v482
      %v553 = vunpack.c.l.b16 %v483
      %v554 = vunpack.c.l.b16 %v484
      %v555 = vunpack.c.h.b16 %v484
      %v556 = vunpack.c.l.b16 %v485
      %v557 = vunpack.c.l.b16 %v486
      %v558 = vunpack.c.h.b16 %v486
      %v559 = vunpack.c.l.b16 %v487
      %v560 = vunpack.c.l.b16 %v488
      %v561 = vunpack.c.h.b16 %v488
      %v562 = vunpack.c.l.b16 %v489
      %v563 = vunpack.c.l.b16 %v490
      %v564 = vunpack.c.h.b16 %v490
      %v565 = vunpack.c.l.b16 %v491
      %v566 = vunpack.c.l.b16 %v492
      %v567 = vunpack.c.h.b16 %v492
      %v568 = vunpack.c.l.b16 %v493
      %v569 = vunpack.c.l.b16 %v494
      %v570 = vunpack.c.h.b16 %v494
      %v571 = vunpack.c.l.b16 %v495
      %v572 = vunpack.c.l.b16 %v496
      %v573 = vunpack.c.h.b16 %v496
      %v574 = vunpack.c.l.b16 %v497
      %v575 = vunpack.c.l.b16 %v498
      %v576 = vunpack.c.h.b16 %v498
      %v577 = vunpack.c.l.b16 %v499
      %v578 = vunpack.c.l.b16 %v500
      %v579 = vunpack.c.h.b16 %v500
      %v580 = vunpack.c.l.b16 %v501
      %v581 = vunpack.c.l.b16 %v502
      %v582 = vunpack.c.h.b16 %v502
      %v583 = vunpack.c.l.b16 %v503
      %v584 = vpack.c.b16 %v539, %v536
      %v585 = vpack.c.b16 %v540, %v537
      %v586 = vpack.c.b16 %v541, %v538
      %v587 = vpack.c.b16 %v545, %v542
      %v588 = vpack.c.b16 %v546, %v543
      %v589 = vpack.c.b16 %v547, %v544
      %v590 = vpack.c.b16 %v551, %v548
      %v591 = vpack.c.b16 %v552, %v549
      %v592 = vpack.c.b16 %v553, %v550
      %v593 = vpack.c.b16 %v557, %v554
      %v594 = vpack.c.b16 %v558, %v555
      %v595 = vpack.c.b16 %v559, %v556
      %v596 = vpack.c.b16 %v563, %v560
      %v597 = vpack.c.b16 %v564, %v561
      %v598 = vpack.c.b16 %v565, %v562
      %v599 = vpack.c.b16 %v569, %v566
      %v600 = vpack.c.b16 %v570, %v567
      %v601 = vpack.c.b16 %v571, %v568
      %v602 = vpack.c.b16 %v575, %v572
      %v603 = vpack.c.b16 %v576, %v573
      %v604 = vpack.c.b16 %v577, %v574
      %v605 = vpack.c.b16 %v581, %v578
      %v606 = vpack.c.b16 %v582, %v579
      %v607 = vpack.c.b16 %v583, %v580
      %vm624 = vcmask 523264
      %v626 = vsel %vm624, %v586, 0
      %v629 = vsel %vm624, %v589, 0
      %v632 = vsel %vm624, %v592, 0
      %v635 = vsel %vm624, %v595, 0
      %v638 = vsel %vm624, %v598, 0
      %v641 = vsel %vm624, %v601, 0
      %v644 = vsel %vm624, %v604, 0
      %v647 = vsel %vm624, %v607, 0
      %649 = vmatprep.subr.bf16.mxu0 %v433
      %650 = vmatpush1.bf16.msra.mxu0 %v432
      %651 = vmatprep.subr.bf16.mxu0 %v435
      %652 = vmatpush1.bf16.msra.mxu0 %v434
      %653 = vmatprep.subr.bf16.mxu0 %v437
      %654 = vmatpush1.bf16.msra.mxu0 %v436
      %655 = vmatprep.subr.bf16.mxu0 %v439
      %656 = vmatpush1.bf16.msra.mxu0 %v438
      %657 = vmatprep.subr.bf16.mxu0 %v441
      %658 = vmatpush1.bf16.msra.mxu0 %v440
      %659 = vmatprep.subr.bf16.mxu0 %v443
      %660 = vmatpush1.bf16.msra.mxu0 %v442
      %661 = vmatprep.subr.bf16.mxu0 %v445
      %662 = vmatpush1.bf16.msra.mxu0 %v444
      %663 = vmatprep.subr.bf16.mxu0 %v447
      %664 = vmatpush1.bf16.msra.mxu0 %v446
      %665 = vmatprep.subr.bf16.mxu0 %v449
      %666 = vmatpush1.bf16.msra.mxu0 %v448
      %667 = vmatprep.subr.bf16.mxu0 %v451
      %668 = vmatpush1.bf16.msra.mxu0 %v450
      %669 = vmatprep.subr.bf16.mxu0 %v453
      %670 = vmatpush1.bf16.msra.mxu0 %v452
      %671 = vmatprep.subr.bf16.mxu0 %v455
      %672 = vmatpush1.bf16.msra.mxu0 %v454
      %673 = vmatprep.subr.bf16.mxu0 %v457
      %674 = vmatpush1.bf16.msra.mxu0 %v456
      %675 = vmatprep.subr.bf16.mxu0 %v459
      %676 = vmatpush1.bf16.msra.mxu0 %v458
      %677 = vmatprep.subr.bf16.mxu0 %v461
      %678 = vmatpush1.bf16.msra.mxu0 %v460
      %679 = vmatprep.subr.bf16.mxu0 %v463
      %680 = vmatpush1.bf16.msra.mxu0 %v462
      %681 = vmatprep.mubr.bf16.mxu0 %v585
      %682 = vmatmul.mubr.bf16.gmra.mrb[0].mxu0 %v584
      %v683 = vpop.f32.mrb[0].mxu0
      %v684 = vadd.f32 0.0, %v683
      %v685 = vpop.f32.mrb[0].mxu0
      %v686 = vadd.f32 0.0, %v685
      %v687 = vpop.f32.mrb[0].mxu0
      %v688 = vadd.f32 0.0, %v687
      %v689 = vpop.f32.mrb[0].mxu0
      %v690 = vadd.f32 0.0, %v689
      %691 = vmatprep.mubr.bf16.mxu0 %v588
      %692 = vmatmul.mubr.bf16.gmra.mrb[0].mxu0 %v587
      %v693 = vpop.f32.mrb[0].mxu0
      %v694 = vadd.f32 0.0, %v693
      %v695 = vpop.f32.mrb[0].mxu0
      %v696 = vadd.f32 0.0, %v695
      %v697 = vpop.f32.mrb[0].mxu0
      %v698 = vadd.f32 0.0, %v697
      %v699 = vpop.f32.mrb[0].mxu0
      %v700 = vadd.f32 0.0, %v699
      %701 = vmatprep.mubr.bf16.mxu0 %v591
      %702 = vmatmul.mubr.bf16.gmra.mrb[0].mxu0 %v590
      %v703 = vpop.f32.mrb[0].mxu0
      %v704 = vadd.f32 0.0, %v703
      %v705 = vpop.f32.mrb[0].mxu0
      %v706 = vadd.f32 0.0, %v705
      %v707 = vpop.f32.mrb[0].mxu0
      %v708 = vadd.f32 0.0, %v707
      %v709 = vpop.f32.mrb[0].mxu0
      %v710 = vadd.f32 0.0, %v709
      %711 = vmatprep.mubr.bf16.mxu0 %v594
      %712 = vmatmul.mubr.bf16.gmra.mrb[0].mxu0 %v593
      %v713 = vpop.f32.mrb[0].mxu0
      %v714 = vadd.f32 0.0, %v713
      %v715 = vpop.f32.mrb[0].mxu0
      %v716 = vadd.f32 0.0, %v715
      %v717 = vpop.f32.mrb[0].mxu0
      %v718 = vadd.f32 0.0, %v717
      %v719 = vpop.f32.mrb[0].mxu0
      %v720 = vadd.f32 0.0, %v719
      %721 = vmatprep.mubr.bf16.mxu0 %v597
      %722 = vmatmul.mubr.bf16.gmra.mrb[0].mxu0 %v596
      %v723 = vpop.f32.mrb[0].mxu0
      %v724 = vadd.f32 0.0, %v723
      %v725 = vpop.f32.mrb[0].mxu0
      %v726 = vadd.f32 0.0, %v725
      %v727 = vpop.f32.mrb[0].mxu0
      %v728 = vadd.f32 0.0, %v727
      %v729 = vpop.f32.mrb[0].mxu0
      %v730 = vadd.f32 0.0, %v729
      %731 = vmatprep.mubr.bf16.mxu0 %v600
      %732 = vmatmul.mubr.bf16.gmra.mrb[0].mxu0 %v599
      %v733 = vpop.f32.mrb[0].mxu0
      %v734 = vadd.f32 0.0, %v733
      %v735 = vpop.f32.mrb[0].mxu0
      %v736 = vadd.f32 0.0, %v735
      %v737 = vpop.f32.mrb[0].mxu0
      %v738 = vadd.f32 0.0, %v737
      %v739 = vpop.f32.mrb[0].mxu0
      %v740 = vadd.f32 0.0, %v739
      %741 = vmatprep.mubr.bf16.mxu0 %v603
      %742 = vmatmul.mubr.bf16.gmra.mrb[0].mxu0 %v602
      %v743 = vpop.f32.mrb[0].mxu0
      %v744 = vadd.f32 0.0, %v743
      %v745 = vpop.f32.mrb[0].mxu0
      %v746 = vadd.f32 0.0, %v745
      %v747 = vpop.f32.mrb[0].mxu0
      %v748 = vadd.f32 0.0, %v747
      %v749 = vpop.f32.mrb[0].mxu0
      %v750 = vadd.f32 0.0, %v749
      %751 = vmatprep.mubr.bf16.mxu0 %v606
      %752 = vmatmul.mubr.bf16.gmra.mrb[0].mxu0 %v605
      %v753 = vpop.f32.mrb[0].mxu0
      %v754 = vadd.f32 0.0, %v753
      %v755 = vpop.f32.mrb[0].mxu0
      %v756 = vadd.f32 0.0, %v755
      %v757 = vpop.f32.mrb[0].mxu0
      %v758 = vadd.f32 0.0, %v757
      %v759 = vpop.f32.mrb[0].mxu0
      %v760 = vadd.f32 0.0, %v759
      %761 = vdwg.mxu0
      %762 = vmatprep.subr.bf16.mxu0 %v465
      %763 = vmatpush1.bf16.msra.mxu0 %v464
      %764 = vmatprep.subr.bf16.mxu0 %v467
      %765 = vmatpush1.bf16.msra.mxu0 %v466
      %766 = vmatprep.subr.bf16.mxu0 %v469
      %767 = vmatpush1.bf16.msra.mxu0 %v468
      %768 = vmatprep.subr.bf16.mxu0 %v471
      %769 = vmatpush1.bf16.msra.mxu0 %v470
      %770 = vmatprep.subr.bf16.mxu0 0
      %771 = vmatpush1.bf16.msra.mxu0 0
      %772 = vmatprep.subr.bf16.mxu0 0
      %773 = vmatpush1.bf16.msra.mxu0 0
      %774 = vmatprep.subr.bf16.mxu0 0
      %775 = vmatpush1.bf16.msra.mxu0 0
      %776 = vmatprep.subr.bf16.mxu0 0
      %777 = vmatpush1.bf16.msra.mxu0 0
      %778 = vmatprep.subr.bf16.mxu0 0
      %779 = vmatpush1.bf16.msra.mxu0 0
      %780 = vmatprep.subr.bf16.mxu0 0
      %781 = vmatpush1.bf16.msra.mxu0 0
      %782 = vmatprep.subr.bf16.mxu0 0
      %783 = vmatpush1.bf16.msra.mxu0 0
      %784 = vmatprep.subr.bf16.mxu0 0
      %785 = vmatpush1.bf16.msra.mxu0 0
      %786 = vmatprep.subr.bf16.mxu0 0
      %787 = vmatpush1.bf16.msra.mxu0 0
      %788 = vmatprep.subr.bf16.mxu0 0
      %789 = vmatpush1.bf16.msra.mxu0 0
      %790 = vmatprep.subr.bf16.mxu0 0
      %791 = vmatpush1.bf16.msra.mxu0 0
      %792 = vmatprep.subr.bf16.mxu0 0
      %793 = vmatpush1.bf16.msra.mxu0 0
      %794 = vmatprep.mubr.bf16.mxu0 0
      %795 = vmatmul.mubr.bf16.gmra.mrb[0].mxu0 %v626
      %v796 = vpop.f32.mrb[0].mxu0
      %v797 = vadd.f32 %v684, %v796
      %v798 = vpop.f32.mrb[0].mxu0
      %v799 = vadd.f32 %v686, %v798
      %v800 = vpop.f32.mrb[0].mxu0
      %v801 = vadd.f32 %v688, %v800
      %v802 = vpop.f32.mrb[0].mxu0
      %v803 = vadd.f32 %v690, %v802
      %804 = vmatprep.mubr.bf16.mxu0 0
      %805 = vmatmul.mubr.bf16.gmra.mrb[0].mxu0 %v629
      %v806 = vpop.f32.mrb[0].mxu0
      %v807 = vadd.f32 %v694, %v806
      %v808 = vpop.f32.mrb[0].mxu0
      %v809 = vadd.f32 %v696, %v808
      %v810 = vpop.f32.mrb[0].mxu0
      %v811 = vadd.f32 %v698, %v810
      %v812 = vpop.f32.mrb[0].mxu0
      %v813 = vadd.f32 %v700, %v812
      %814 = vmatprep.mubr.bf16.mxu0 0
      %815 = vmatmul.mubr.bf16.gmra.mrb[0].mxu0 %v632
      %v816 = vpop.f32.mrb[0].mxu0
      %v817 = vadd.f32 %v704, %v816
      %v818 = vpop.f32.mrb[0].mxu0
      %v819 = vadd.f32 %v706, %v818
      %v820 = vpop.f32.mrb[0].mxu0
      %v821 = vadd.f32 %v708, %v820
      %v822 = vpop.f32.mrb[0].mxu0
      %v823 = vadd.f32 %v710, %v822
      %824 = vmatprep.mubr.bf16.mxu0 0
      %825 = vmatmul.mubr.bf16.gmra.mrb[0].mxu0 %v635
      %v826 = vpop.f32.mrb[0].mxu0
      %v827 = vadd.f32 %v714, %v826
      %v828 = vpop.f32.mrb[0].mxu0
      %v829 = vadd.f32 %v716, %v828
      %v830 = vpop.f32.mrb[0].mxu0
      %v831 = vadd.f32 %v718, %v830
      %v832 = vpop.f32.mrb[0].mxu0
      %v833 = vadd.f32 %v720, %v832
      %834 = vmatprep.mubr.bf16.mxu0 0
      %835 = vmatmul.mubr.bf16.gmra.mrb[0].mxu0 %v638
      %v836 = vpop.f32.mrb[0].mxu0
      %v837 = vadd.f32 %v724, %v836
      %v838 = vpop.f32.mrb[0].mxu0
      %v839 = vadd.f32 %v726, %v838
      %v840 = vpop.f32.mrb[0].mxu0
      %v841 = vadd.f32 %v728, %v840
      %v842 = vpop.f32.mrb[0].mxu0
      %v843 = vadd.f32 %v730, %v842
      %844 = vmatprep.mubr.bf16.mxu0 0
      %845 = vmatmul.mubr.bf16.gmra.mrb[0].mxu0 %v641
      %v846 = vpop.f32.mrb[0].mxu0
      %v847 = vadd.f32 %v734, %v846
      %v848 = vpop.f32.mrb[0].mxu0
      %v849 = vadd.f32 %v736, %v848
      %v850 = vpop.f32.mrb[0].mxu0
      %v851 = vadd.f32 %v738, %v850
      %v852 = vpop.f32.mrb[0].mxu0
      %v853 = vadd.f32 %v740, %v852
      %854 = vmatprep.mubr.bf16.mxu0 0
      %855 = vmatmul.mubr.bf16.gmra.mrb[0].mxu0 %v644
      %v856 = vpop.f32.mrb[0].mxu0
      %v857 = vadd.f32 %v744, %v856
      %v858 = vpop.f32.mrb[0].mxu0
      %v859 = vadd.f32 %v746, %v858
      %v860 = vpop.f32.mrb[0].mxu0
      %v861 = vadd.f32 %v748, %v860
      %v862 = vpop.f32.mrb[0].mxu0
      %v863 = vadd.f32 %v750, %v862
      %864 = vmatprep.mubr.bf16.mxu0 0
      %865 = vmatmul.mubr.bf16.gmra.mrb[0].mxu0 %v647
      %v866 = vpop.f32.mrb[0].mxu0
      %v867 = vadd.f32 %v754, %v866
      %v868 = vpop.f32.mrb[0].mxu0
      %v869 = vadd.f32 %v756, %v868
      %v870 = vpop.f32.mrb[0].mxu0
      %v871 = vadd.f32 %v758, %v870
      %v872 = vpop.f32.mrb[0].mxu0
      %v873 = vadd.f32 %v760, %v872
      %874 = vdwg.mxu0
      %875 = vst [vmem:[%s230] sm:$0xff] %v797
      %876 = vst [vmem:[%s230 + $0x8] sm:$0xff] %v799
      %877 = vst [vmem:[%s230 + $0x10] sm:$0xff] %v801
      %878 = vst [vmem:[%s230 + $0x18] sm:$0xff] %v803
      %879 = vst [vmem:[%s230 + $0x20] sm:$0xff] %v807
      %880 = vst [vmem:[%s230 + $0x28] sm:$0xff] %v809
      %881 = vst [vmem:[%s230 + $0x30] sm:$0xff] %v811
      %882 = vst [vmem:[%s230 + $0x38] sm:$0xff] %v813
      %883 = vst [vmem:[%s230 + $0x40] sm:$0xff] %v817
      %884 = vst [vmem:[%s230 + $0x48] sm:$0xff] %v819
      %885 = vst [vmem:[%s230 + $0x50] sm:$0xff] %v821
      %886 = vst [vmem:[%s230 + $0x58] sm:$0xff] %v823
      %887 = vst [vmem:[%s230 + $0x60] sm:$0xff] %v827
      %888 = vst [vmem:[%s230 + $0x68] sm:$0xff] %v829
      %889 = vst [vmem:[%s230 + $0x70] sm:$0xff] %v831
      %890 = vst [vmem:[%s230 + $0x78] sm:$0xff] %v833
      %891 = vst [vmem:[%s230 + $0x80] sm:$0xff] %v837
      %892 = vst [vmem:[%s230 + $0x88] sm:$0xff] %v839
      %893 = vst [vmem:[%s230 + $0x90] sm:$0xff] %v841
      %894 = vst [vmem:[%s230 + $0x98] sm:$0xff] %v843
      %895 = vst [vmem:[%s230 + $0xa0] sm:$0xff] %v847
      %896 = vst [vmem:[%s230 + $0xa8] sm:$0xff] %v849
      %897 = vst [vmem:[%s230 + $0xb0] sm:$0xff] %v851
      %898 = vst [vmem:[%s230 + $0xb8] sm:$0xff] %v853
      %899 = vst [vmem:[%s230 + $0xc0] sm:$0xff] %v857
      %900 = vst [vmem:[%s230 + $0xc8] sm:$0xff] %v859
      %901 = vst [vmem:[%s230 + $0xd0] sm:$0xff] %v861
      %902 = vst [vmem:[%s230 + $0xd8] sm:$0xff] %v863
      %903 = vst [vmem:[%s230 + $0xe0] sm:$0xff] %v867
      %904 = vst [vmem:[%s230 + $0xe8] sm:$0xff] %v869
      %905 = vst [vmem:[%s230 + $0xf0] sm:$0xff] %v871
      %906 = vst [vmem:[%s230 + $0xf8] sm:$0xff] %v873
      %v907 = vld [vmem:[%s3] sm:$0xff]
      %v908 = vld [vmem:[%s3 + $0x8] sm:$0xff]
      %v909 = vld [vmem:[%s3 + $0x10] sm:$0xff]
      %v910 = vld [vmem:[%s3 + $0x18] sm:$0xff]
      %v911 = vld [vmem:[%s3 + $0x20] sm:$0xff]
      %v912 = vld [vmem:[%s3 + $0x28] sm:$0xff]
      %v913 = vld [vmem:[%s3 + $0x30] sm:$0xff]
      %v914 = vld [vmem:[%s3 + $0x38] sm:$0xff]
      %v915 = vld [vmem:[%s3 + $0x40] sm:$0xff]
      %v916 = vld [vmem:[%s3 + $0x48] sm:$0xff]
      %v917 = vld [vmem:[%s3 + $0x50] sm:$0xff]
      %v918 = vld [vmem:[%s3 + $0x58] sm:$0xff]
      %v919 = vld [vmem:[%s3 + $0x60] sm:$0xff]
      %v920 = vld [vmem:[%s3 + $0x68] sm:$0xff]
      %v921 = vld [vmem:[%s3 + $0x70] sm:$0xff]
      %v922 = vld [vmem:[%s3 + $0x78] sm:$0xff]
      %v923 = vadd.f32 %v797, %v799
      %924 = vadd.xlane.f32.xlu0 %v923
      %v925 = vpop.xlane.xlu0 %924
      %v926 = vadd.f32 %v801, %v803
      %927 = vadd.xlane.f32.xlu0 %v926
      %v928 = vpop.xlane.xlu0 %927
      %v929 = vadd.f32 %v807, %v809
      %930 = vadd.xlane.f32.xlu0 %v929
      %v931 = vpop.xlane.xlu0 %930
      %v932 = vadd.f32 %v811, %v813
      %933 = vadd.xlane.f32.xlu0 %v932
      %v934 = vpop.xlane.xlu0 %933
      %v935 = vadd.f32 %v817, %v819
      %936 = vadd.xlane.f32.xlu0 %v935
      %v937 = vpop.xlane.xlu0 %936
      %v938 = vadd.f32 %v821, %v823
      %939 = vadd.xlane.f32.xlu0 %v938
      %v940 = vpop.xlane.xlu0 %939
      %v941 = vadd.f32 %v827, %v829
      %942 = vadd.xlane.f32.xlu0 %v941
      %v943 = vpop.xlane.xlu0 %942
      %v944 = vadd.f32 %v831, %v833
      %945 = vadd.xlane.f32.xlu0 %v944
      %v946 = vpop.xlane.xlu0 %945
      %v947 = vadd.f32 %v837, %v839
      %948 = vadd.xlane.f32.xlu0 %v947
      %v949 = vpop.xlane.xlu0 %948
      %v950 = vadd.f32 %v841, %v843
      %951 = vadd.xlane.f32.xlu0 %v950
      %v952 = vpop.xlane.xlu0 %951
      %v953 = vadd.f32 %v847, %v849
      %954 = vadd.xlane.f32.xlu0 %v953
      %v955 = vpop.xlane.xlu0 %954
      %v956 = vadd.f32 %v851, %v853
      %957 = vadd.xlane.f32.xlu0 %v956
      %v958 = vpop.xlane.xlu0 %957
      %v959 = vadd.f32 %v857, %v859
      %960 = vadd.xlane.f32.xlu0 %v959
      %v961 = vpop.xlane.xlu0 %960
      %v962 = vadd.f32 %v861, %v863
      %963 = vadd.xlane.f32.xlu0 %v962
      %v964 = vpop.xlane.xlu0 %963
      %v965 = vadd.f32 %v867, %v869
      %966 = vadd.xlane.f32.xlu0 %v965
      %v967 = vpop.xlane.xlu0 %966
      %v968 = vadd.f32 %v871, %v873
      %969 = vadd.xlane.f32.xlu0 %v968
      %v970 = vpop.xlane.xlu0 %969
      %v971 = vadd.f32 %v907, %v925
      %v972 = vadd.f32 %v908, %v928
      %v973 = vadd.f32 %v909, %v931
      %v974 = vadd.f32 %v910, %v934
      %v975 = vadd.f32 %v911, %v937
      %v976 = vadd.f32 %v912, %v940
      %v977 = vadd.f32 %v913, %v943
      %v978 = vadd.f32 %v914, %v946
      %v979 = vadd.f32 %v915, %v949
      %v980 = vadd.f32 %v916, %v952
      %v981 = vadd.f32 %v917, %v955
      %v982 = vadd.f32 %v918, %v958
      %v983 = vadd.f32 %v919, %v961
      %v984 = vadd.f32 %v920, %v964
      %v985 = vadd.f32 %v921, %v967
      %v986 = vadd.f32 %v922, %v970
      %vm987 = vcmask 7168
      %988 = vst.msk [vmem:[%s3] sm:$0xff] %vm987, %v971
      %989 = vst.msk [vmem:[%s3 + $0x8] sm:$0xff] %vm987, %v972
      %990 = vst.msk [vmem:[%s3 + $0x10] sm:$0xff] %vm987, %v973
      %991 = vst.msk [vmem:[%s3 + $0x18] sm:$0xff] %vm987, %v974
      %992 = vst.msk [vmem:[%s3 + $0x20] sm:$0xff] %vm987, %v975
      %993 = vst.msk [vmem:[%s3 + $0x28] sm:$0xff] %vm987, %v976
      %994 = vst.msk [vmem:[%s3 + $0x30] sm:$0xff] %vm987, %v977
      %995 = vst.msk [vmem:[%s3 + $0x38] sm:$0xff] %vm987, %v978
      %996 = vst.msk [vmem:[%s3 + $0x40] sm:$0xff] %vm987, %v979
      %997 = vst.msk [vmem:[%s3 + $0x48] sm:$0xff] %vm987, %v980
      %998 = vst.msk [vmem:[%s3 + $0x50] sm:$0xff] %vm987, %v981
      %999 = vst.msk [vmem:[%s3 + $0x58] sm:$0xff] %vm987, %v982
      %1000 = vst.msk [vmem:[%s3 + $0x60] sm:$0xff] %vm987, %v983
      %1001 = vst.msk [vmem:[%s3 + $0x68] sm:$0xff] %vm987, %v984
      %1002 = vst.msk [vmem:[%s3 + $0x70] sm:$0xff] %vm987, %v985
      %1003 = vst.msk [vmem:[%s3 + $0x78] sm:$0xff] %vm987, %v986
      %v1004 = vld [vmem:[%s4] sm:$0xff]
      %v1005 = vld [vmem:[%s4 + $0x8] sm:$0xff]
      %v1006 = vld [vmem:[%s4 + $0x10] sm:$0xff]
      %v1007 = vld [vmem:[%s4 + $0x18] sm:$0xff]
      %v1008 = vld [vmem:[%s4 + $0x20] sm:$0xff]
      %v1009 = vld [vmem:[%s4 + $0x28] sm:$0xff]
      %v1010 = vld [vmem:[%s4 + $0x30] sm:$0xff]
      %v1011 = vld [vmem:[%s4 + $0x38] sm:$0xff]
      %v1012 = vld [vmem:[%s4 + $0x40] sm:$0xff]
      %v1013 = vld [vmem:[%s4 + $0x48] sm:$0xff]
      %v1014 = vld [vmem:[%s4 + $0x50] sm:$0xff]
      %v1015 = vld [vmem:[%s4 + $0x58] sm:$0xff]
      %v1016 = vld [vmem:[%s4 + $0x60] sm:$0xff]
      %v1017 = vld [vmem:[%s4 + $0x68] sm:$0xff]
      %v1018 = vld [vmem:[%s4 + $0x70] sm:$0xff]
      %v1019 = vld [vmem:[%s4 + $0x78] sm:$0xff]
      %v1020 = vmul.f32 %v797, %v797
      %v1021 = vmul.f32 %v799, %v799
      %v1022 = vmul.f32 %v801, %v801
      %v1023 = vmul.f32 %v803, %v803
      %v1024 = vmul.f32 %v807, %v807
      %v1025 = vmul.f32 %v809, %v809
      %v1026 = vmul.f32 %v811, %v811
      %v1027 = vmul.f32 %v813, %v813
      %v1028 = vmul.f32 %v817, %v817
      %v1029 = vmul.f32 %v819, %v819
      %v1030 = vmul.f32 %v821, %v821
      %v1031 = vmul.f32 %v823, %v823
      %v1032 = vmul.f32 %v827, %v827
      %v1033 = vmul.f32 %v829, %v829
      %v1034 = vmul.f32 %v831, %v831
      %v1035 = vmul.f32 %v833, %v833
      %v1036 = vmul.f32 %v837, %v837
      %v1037 = vmul.f32 %v839, %v839
      %v1038 = vmul.f32 %v841, %v841
      %v1039 = vmul.f32 %v843, %v843
      %v1040 = vmul.f32 %v847, %v847
      %v1041 = vmul.f32 %v849, %v849
      %v1042 = vmul.f32 %v851, %v851
      %v1043 = vmul.f32 %v853, %v853
      %v1044 = vmul.f32 %v857, %v857
      %v1045 = vmul.f32 %v859, %v859
      %v1046 = vmul.f32 %v861, %v861
      %v1047 = vmul.f32 %v863, %v863
      %v1048 = vmul.f32 %v867, %v867
      %v1049 = vmul.f32 %v869, %v869
      %v1050 = vmul.f32 %v871, %v871
      %v1051 = vmul.f32 %v873, %v873
      %v1052 = vadd.f32 %v1020, %v1021
      %1053 = vadd.xlane.f32.xlu0 %v1052
      %v1054 = vpop.xlane.xlu0 %1053
      %v1055 = vadd.f32 %v1022, %v1023
      %1056 = vadd.xlane.f32.xlu0 %v1055
      %v1057 = vpop.xlane.xlu0 %1056
      %v1058 = vadd.f32 %v1024, %v1025
      %1059 = vadd.xlane.f32.xlu0 %v1058
      %v1060 = vpop.xlane.xlu0 %1059
      %v1061 = vadd.f32 %v1026, %v1027
      %1062 = vadd.xlane.f32.xlu0 %v1061
      %v1063 = vpop.xlane.xlu0 %1062
      %v1064 = vadd.f32 %v1028, %v1029
      %1065 = vadd.xlane.f32.xlu0 %v1064
      %v1066 = vpop.xlane.xlu0 %1065
      %v1067 = vadd.f32 %v1030, %v1031
      %1068 = vadd.xlane.f32.xlu0 %v1067
      %v1069 = vpop.xlane.xlu0 %1068
      %v1070 = vadd.f32 %v1032, %v1033
      %1071 = vadd.xlane.f32.xlu0 %v1070
      %v1072 = vpop.xlane.xlu0 %1071
      %v1073 = vadd.f32 %v1034, %v1035
      %1074 = vadd.xlane.f32.xlu0 %v1073
      %v1075 = vpop.xlane.xlu0 %1074
      %v1076 = vadd.f32 %v1036, %v1037
      %1077 = vadd.xlane.f32.xlu0 %v1076
      %v1078 = vpop.xlane.xlu0 %1077
      %v1079 = vadd.f32 %v1038, %v1039
      %1080 = vadd.xlane.f32.xlu0 %v1079
      %v1081 = vpop.xlane.xlu0 %1080
      %v1082 = vadd.f32 %v1040, %v1041
      %1083 = vadd.xlane.f32.xlu0 %v1082
      %v1084 = vpop.xlane.xlu0 %1083
      %v1085 = vadd.f32 %v1042, %v1043
      %1086 = vadd.xlane.f32.xlu0 %v1085
      %v1087 = vpop.xlane.xlu0 %1086
      %v1088 = vadd.f32 %v1044, %v1045
      %1089 = vadd.xlane.f32.xlu0 %v1088
      %v1090 = vpop.xlane.xlu0 %1089
      %v1091 = vadd.f32 %v1046, %v1047
      %1092 = vadd.xlane.f32.xlu0 %v1091
      %v1093 = vpop.xlane.xlu0 %1092
      %v1094 = vadd.f32 %v1048, %v1049
      %1095 = vadd.xlane.f32.xlu0 %v1094
      %v1096 = vpop.xlane.xlu0 %1095
      %v1097 = vadd.f32 %v1050, %v1051
      %1098 = vadd.xlane.f32.xlu0 %v1097
      %v1099 = vpop.xlane.xlu0 %1098
      %v1100 = vadd.f32 %v1004, %v1054
      %v1101 = vadd.f32 %v1005, %v1057
      %v1102 = vadd.f32 %v1006, %v1060
      %v1103 = vadd.f32 %v1007, %v1063
      %v1104 = vadd.f32 %v1008, %v1066
      %v1105 = vadd.f32 %v1009, %v1069
      %v1106 = vadd.f32 %v1010, %v1072
      %v1107 = vadd.f32 %v1011, %v1075
      %v1108 = vadd.f32 %v1012, %v1078
      %v1109 = vadd.f32 %v1013, %v1081
      %v1110 = vadd.f32 %v1014, %v1084
      %v1111 = vadd.f32 %v1015, %v1087
      %v1112 = vadd.f32 %v1016, %v1090
      %v1113 = vadd.f32 %v1017, %v1093
      %v1114 = vadd.f32 %v1018, %v1096
      %v1115 = vadd.f32 %v1019, %v1099
      %1116 = vst.msk [vmem:[%s4] sm:$0xff] %vm987, %v1100
      %1117 = vst.msk [vmem:[%s4 + $0x8] sm:$0xff] %vm987, %v1101
      %1118 = vst.msk [vmem:[%s4 + $0x10] sm:$0xff] %vm987, %v1102
      %1119 = vst.msk [vmem:[%s4 + $0x18] sm:$0xff] %vm987, %v1103
      %1120 = vst.msk [vmem:[%s4 + $0x20] sm:$0xff] %vm987, %v1104
      %1121 = vst.msk [vmem:[%s4 + $0x28] sm:$0xff] %vm987, %v1105
      %1122 = vst.msk [vmem:[%s4 + $0x30] sm:$0xff] %vm987, %v1106
      %1123 = vst.msk [vmem:[%s4 + $0x38] sm:$0xff] %vm987, %v1107
      %1124 = vst.msk [vmem:[%s4 + $0x40] sm:$0xff] %vm987, %v1108
      %1125 = vst.msk [vmem:[%s4 + $0x48] sm:$0xff] %vm987, %v1109
      %1126 = vst.msk [vmem:[%s4 + $0x50] sm:$0xff] %vm987, %v1110
      %1127 = vst.msk [vmem:[%s4 + $0x58] sm:$0xff] %vm987, %v1111
      %1128 = vst.msk [vmem:[%s4 + $0x60] sm:$0xff] %vm987, %v1112
      %1129 = vst.msk [vmem:[%s4 + $0x68] sm:$0xff] %vm987, %v1113
      %1130 = vst.msk [vmem:[%s4 + $0x70] sm:$0xff] %vm987, %v1114
      %1131 = vst.msk [vmem:[%s4 + $0x78] sm:$0xff] %vm987, %v1115
      %s1132 = smul.u32 2, %s21
      %p1133 = scmp.lt.s32.totalorder %s20, 1
      %s1134 = scalar_select %p1133, %s20, 1
      %p1135 = scmp.lt.s32.totalorder %s1132, 1
      %s1136 = scalar_select %p1135, %s1132, 1
      %s1137 = smul.addr %s1134, 32
      %s1138 = sadd.s32 %s1136, %s1137
      %s1139 = smul.addr %s1138, 8
      %s1140 = scalar_lea.vmem %s2, %s1139
      // Predicated region
      $region33: #{relu_conv1x1_batchnorm.2} parent=27 // pred_check
        %p1141 = pneg %p97
      $region34: #{relu_conv1x1_batchnorm.2} parent=27 // pred_check_branch
        %1143 = sbr.rel (%p1141) target = $region36
      $region35: #{relu_conv1x1_batchnorm.2} parent=27 // pred_region
        %s1144 = smul.u32 2, %s21
      $region36: #{relu_conv1x1_batchnorm.2} parent=27 // pred_fallthru
        _
      // Predicated region
      $region37: #{relu_conv1x1_batchnorm.2} parent=27 // pred_check
        %p1145 = pneg %p118
      $region38: #{relu_conv1x1_batchnorm.2} parent=27 // pred_check_branch
        %1147 = sbr.rel (%p1145) target = $region40
      $region39: #{relu_conv1x1_batchnorm.2} parent=27 // pred_region
        _
      $region40: #{relu_conv1x1_batchnorm.2} parent=27 // pred_fallthru
        _
      // Predicated region
      $region41: #{relu_conv1x1_batchnorm.2} parent=27 // pred_check
        %p1148 = pneg %p139
      $region42: #{relu_conv1x1_batchnorm.2} parent=27 // pred_check_branch
        %1150 = sbr.rel (%p1148) target = $region44
      $region43: #{relu_conv1x1_batchnorm.2} parent=27 // pred_region
        _
      $region44: #{relu_conv1x1_batchnorm.2} parent=27 // pred_fallthru
        _
      // Predicated region
      $region45: #{relu_conv1x1_batchnorm.2} parent=27 // pred_check
        %p1151 = pneg %p118
      $region46: #{relu_conv1x1_batchnorm.2} parent=27 // pred_check_branch
        %1153 = sbr.rel (%p1151) target = $region48
      $region47: #{relu_conv1x1_batchnorm.2} parent=27 // pred_region
        _
      $region48: #{relu_conv1x1_batchnorm.2} parent=27 // pred_fallthru
        _
      // Predicated region
      $region49: #{relu_conv1x1_batchnorm.2} parent=27 // pred_check
        %p1154 = pneg %p139
      $region50: #{relu_conv1x1_batchnorm.2} parent=27 // pred_check_branch
        %1156 = sbr.rel (%p1154) target = $region52
      $region51: #{relu_conv1x1_batchnorm.2} parent=27 // pred_region
        _
      $region52: #{relu_conv1x1_batchnorm.2} parent=27 // pred_fallthru
        _
    $region28: #{relu_conv1x1_batchnorm.2} parent=5 // pred_fallthru
      _
    %p1157 = scmp.le.s32.totalorder 2, %s11
    // Predicated region
    $region53: #{relu_conv1x1_batchnorm.2} parent=5 // pred_check
      %p1158 = pneg %p1157
    $region54: #{relu_conv1x1_batchnorm.2} parent=5 // pred_check_branch
      %1160 = sbr.rel (%p1158) target = $region56
    $region55: #{relu_conv1x1_batchnorm.2} parent=5 // pred_region
      %s1161 = ssub.s32 %s11, 2
      // Predicated region
      $region57: #{relu_conv1x1_batchnorm.2} parent=55 // pred_check
        %p1162 = pneg %p103
      $region58: #{relu_conv1x1_batchnorm.2} parent=55 // pred_check_branch
        %1164 = sbr.rel (%p1162) target = $region60
      $region59: #{relu_conv1x1_batchnorm.2} parent=55 // pred_region
        %s1165 = smul.u32 2, %s23
        %p1166 = scmp.lt.s32.totalorder %s22, 1
        %s1167 = scalar_select %p1166, %s22, 1
        %p1168 = scmp.lt.s32.totalorder %s1165, 1
        %s1169 = scalar_select %p1168, %s1165, 1
        %s1170 = smul.addr %s1167, 32
        %s1171 = sadd.s32 %s1169, %s1170
        %s1172 = smul.addr %s1171, 8
        %s1173 = scalar_lea.vmem %s2, %s1172
      $region60: #{relu_conv1x1_batchnorm.2} parent=55 // pred_fallthru
        _
    $region56: #{relu_conv1x1_batchnorm.2} parent=5 // pred_fallthru
      _
  $region6: #{relu_conv1x1_batchnorm.2} parent=0 // loop_footer
    %s15 = sadd.s32 1, %s11
  $region7: #{relu_conv1x1_batchnorm.2} parent=0 // loop_footer_branch
    %10 = sbr.rel target = $region3
  $region8: #{relu_conv1x1_batchnorm.2} parent=0 // loop_exit
    _

</llo_original>
